<compile_context>
chip_gen: v7x
topology: tpu7x:2x2x1
jax: 0.10.0
libtpu: 0.0.40
codegen_flags: <defaults>
</compile_context>

<pallas_src>
import math

import jax
import jax.numpy as jnp
from jax import lax
from jax.experimental import pallas as pl
from jax.experimental.pallas import tpu as pltpu


def _round_up(a: int, b: int) -> int:
    return ((a + b - 1) // b) * b


def _choose_tiles(n_pad: int):
    """adj tile: 256 rows; columns grow up to 2048 while they divide N_pad."""
    tm = 256
    tk = 256
    while tk * 2 <= 2048 and tk * 2 <= n_pad and n_pad % (tk * 2) == 0:
        tk *= 2
    return tm, tk


def _make_fused_kernel(sigma: float, n_clusters: int, tm: int, tk: int):
    """Fused 5-layer SDCN-GNN kernel, specialized at trace time."""

    def kernel(blend_ref, w_ref, adj_ref, out_ref, h_ref, sup_ref, acc_ref):
        l = pl.program_id(0)          # layer index
        i = pl.program_id(1)          # adj row block
        k = pl.program_id(2)          # adj column block (reduction)
        num_l = pl.num_programs(0)
        num_k = pl.num_programs(2)

        # One-time init: h <- x (blend slot 0 holds x).
        @pl.when((l == 0) & (i == 0) & (k == 0))
        def _init_h():
            h_ref[...] = blend_ref[0]

        # Once per layer (on the fully materialized h of the previous layer):
        #   support = ((1 - sigma_l) * h + sigma_l * aux_l) @ W_l
        # Layer 0 has no blend: sigma_0 == 0 and h == x.
        @pl.when((i == 0) & (k == 0))
        def _compute_support():
            sig = jnp.float32(sigma) * (l > 0).astype(jnp.float32)
            feat = (1.0 - sig) * h_ref[...] + sig * blend_ref[0]
            sup = jnp.dot(feat.astype(jnp.bfloat16),
                          w_ref[0].astype(jnp.bfloat16),
                          preferred_element_type=jnp.float32)
            sup_ref[...] = sup.astype(sup_ref.dtype)

        # Zero the f32 accumulator at the start of each (layer, row-block) reduction.
        @pl.when(k == 0)
        def _zero_acc():
            acc_ref[...] = jnp.zeros_like(acc_ref)

        # acc += adj[i_block, k_block] @ support[k_block]   (bf16 x bf16 -> f32 on MXU)
        k_off = pl.multiple_of(k * tk, tk)
        acc_ref[...] += jnp.dot(adj_ref[...],
                                sup_ref[pl.ds(k_off, tk), :],
                                preferred_element_type=jnp.float32)

        i_off = pl.multiple_of(i * tm, tm)

        # Hidden layers: relu on the completed sum, write back into h (VMEM).
        @pl.when((k == num_k - 1) & (l < num_l - 1))
        def _store_hidden():
            h_ref[pl.ds(i_off, tm), :] = jnp.maximum(acc_ref[...], 0.0)

        # Last layer: row-softmax over the first n_clusters (real) columns only.
        @pl.when((k == num_k - 1) & (l == num_l - 1))
        def _store_output():
            logits = acc_ref[...]
            col = lax.broadcasted_iota(jnp.int32, logits.shape, 1)
            logits = jnp.where(col < n_clusters, logits, -1e30)
            m = jnp.max(logits, axis=1, keepdims=True)
            e = jnp.exp(logits - m)
            denom = jnp.sum(e, axis=1, keepdims=True)
            p = e * pl.reciprocal(denom, approx=True)
            out_ref[pl.ds(i_off, tm), :] = p.astype(out_ref.dtype)

    return kernel


def sdcn_gnn_forward(params, x, adj, tra1, tra2, tra3, z, sigma=0.5):
    """SDCN_GNN.forward: 5 fused GNN layers + final row-softmax."""
    w5 = params[4]
    n = x.shape[0]
    n_clusters = w5.shape[1]

    feat_dims = ([x.shape[1]] + [w.shape[0] for w in params]
                 + [w.shape[1] for w in params])
    f_pad = _round_up(max(feat_dims), 128)     # lane-dense feature slab
    n_pad = _round_up(n, 256)                  # 256-aligned node count
    tm, tk = _choose_tiles(n_pad)

    def pad2(a, rows, cols):
        a = a.astype(jnp.float32)
        return jnp.pad(a, ((0, rows - a.shape[0]), (0, cols - a.shape[1])))

    # Blend stack: slot 0 is x (only used to seed h; layer-0 sigma is 0).
    blends = jnp.stack([pad2(x, n_pad, f_pad), pad2(tra1, n_pad, f_pad),
                        pad2(tra2, n_pad, f_pad), pad2(tra3, n_pad, f_pad),
                        pad2(z, n_pad, f_pad)])                    # [5, N_pad, F_pad]
    w_stack = jnp.stack([pad2(w, f_pad, f_pad) for w in params])   # [5, F_pad, F_pad]
    # TODO(synk): torch.spmm uses a sparse adjacency; here it is densified,
    # zero-padded and streamed as bf16 MXU tiles.
    adj_bf16 = pad2(adj, n_pad, n_pad).astype(jnp.bfloat16)        # [N_pad, N_pad]

    num_layers = w_stack.shape[0]
    grid = (num_layers, n_pad // tm, n_pad // tk)
    kernel = _make_fused_kernel(float(sigma), int(n_clusters), tm, tk)

    out = pl.pallas_call(
        kernel,
        out_shape=jax.ShapeDtypeStruct((n_pad, f_pad), jnp.float32),
        grid_spec=pltpu.PrefetchScalarGridSpec(
            num_scalar_prefetch=0,
            grid=grid,
            in_specs=[
                # Per-layer blend matrix (x / tra1..3 / z): resident for the layer.
                pl.BlockSpec((1, n_pad, f_pad), lambda l, i, k: (l, 0, 0)),
                # Per-layer weight.
                pl.BlockSpec((1, f_pad, f_pad), lambda l, i, k: (l, 0, 0)),
                # Streamed adjacency tile (the dominant HBM traffic).
                pl.BlockSpec((tm, tk), lambda l, i, k: (i, k)),
            ],
            out_specs=pl.BlockSpec((n_pad, f_pad), lambda l, i, k: (0, 0)),
            scratch_shapes=[
                pltpu.VMEM((n_pad, f_pad), jnp.float32),    # h (inter-layer activation)
                pltpu.VMEM((n_pad, f_pad), jnp.bfloat16),   # support = feat @ W
                pltpu.VMEM((tm, f_pad), jnp.float32),       # f32 accumulator
            ]),
        compiler_params=pltpu.CompilerParams(
            dimension_semantics=("arbitrary", "arbitrary", "arbitrary"),
            vmem_limit_bytes=48 * 1024 * 1024),
    )(blends, w_stack, adj_bf16)

    return out[:n, :n_clusters]


def xavier_uniform(key, fan_in, fan_out):
    bound = math.sqrt(6.0 / (fan_in + fan_out))
    return jax.random.uniform(key, (fan_in, fan_out), dtype=jnp.float32,
                              minval=-bound, maxval=bound)


def reference_forward(params, x, adj, tra1, tra2, tra3, z, sigma=0.5):
    """Plain-JAX f32 reference (mirrors the PyTorch module)."""
    w1, w2, w3, w4, w5 = params
    h = jax.nn.relu(adj @ (x @ w1))
    h = jax.nn.relu(adj @ (((1 - sigma) * h + sigma * tra1) @ w2))
    h = jax.nn.relu(adj @ (((1 - sigma) * h + sigma * tra2) @ w3))
    h = jax.nn.relu(adj @ (((1 - sigma) * h + sigma * tra3) @ w4))
    h = adj @ (((1 - sigma) * h + sigma * z) @ w5)
    return jax.nn.softmax(h, axis=1)


if __name__ == "__main__":
    # Small, module-consistent shapes.
    N = 16            # number of graph nodes
    n_input = 32
    n_enc_1, n_enc_2, n_enc_3 = 32, 32, 32
    n_z = 16
    n_clusters = 8
    sigma = 0.5

    key = jax.random.PRNGKey(0)
    keys = jax.random.split(key, 12)

    # Xavier-uniform weights (deterministic).
    params = (
        xavier_uniform(keys[0], n_input, n_enc_1),
        xavier_uniform(keys[1], n_enc_1, n_enc_2),
        xavier_uniform(keys[2], n_enc_2, n_enc_3),
        xavier_uniform(keys[3], n_enc_3, n_z),
        xavier_uniform(keys[4], n_z, n_clusters),
    )

    # Inputs.
    x = jax.random.normal(keys[5], (N, n_input), dtype=jnp.float32)
    tra1 = jax.random.normal(keys[6], (N, n_enc_1), dtype=jnp.float32)
    tra2 = jax.random.normal(keys[7], (N, n_enc_2), dtype=jnp.float32)
    tra3 = jax.random.normal(keys[8], (N, n_enc_3), dtype=jnp.float32)
    z = jax.random.normal(keys[9], (N, n_z), dtype=jnp.float32)

    # Dense row-normalized adjacency (stand-in for the sparse adj in torch.spmm).
    raw_adj = jax.random.uniform(keys[10], (N, N), dtype=jnp.float32)
    raw_adj = (raw_adj > 0.7).astype(jnp.float32) + jnp.eye(N, dtype=jnp.float32)
    adj = raw_adj / jnp.sum(raw_adj, axis=1, keepdims=True)

    predict = sdcn_gnn_forward(params, x, adj, tra1, tra2, tra3, z, sigma=sigma)
    predict = jax.block_until_ready(predict)

    # Cross-check against the plain-JAX f32 reference.  The kernel runs the
    # two matmuls per layer in bf16 (f32 accumulation), so allow a bf16-level
    # tolerance on the final probabilities.
    ref = reference_forward(params, x, adj, tra1, tra2, tra3, z, sigma=sigma)
    assert predict.shape == (N, n_clusters)
    assert bool(jnp.all(jnp.isfinite(predict)))
    assert jnp.allclose(predict, ref, atol=2e-2, rtol=2e-2)

    print("KERNEL_OK")
</pallas_src>

<mosaic_0001>
module attributes {stable_mosaic.version = 11 : i64} {
  func.func @kernel(%arg0: i32, %arg1: i32, %arg2: i32, %arg3: memref<1x256x128xf32, #tpu.memory_space<vmem>>, %arg4: memref<1x128x128xf32, #tpu.memory_space<vmem>>, %arg5: memref<256x256xbf16, #tpu.memory_space<vmem>>, %arg6: memref<256x128xf32, #tpu.memory_space<vmem>>, %arg7: memref<256x128xf32, #tpu.memory_space<vmem>>, %arg8: memref<256x128xbf16, #tpu.memory_space<vmem>>, %arg9: memref<256x128xf32, #tpu.memory_space<vmem>>) attributes {dimension_semantics = [#tpu.dimension_semantics<arbitrary>, #tpu.dimension_semantics<arbitrary>, #tpu.dimension_semantics<arbitrary>], iteration_bounds = array<i64: 5, 1, 1>, scalar_prefetch = 0 : i64, scratch_operands = 3 : i64, tpu.core_type = #tpu.core_type<tc>, window_params = [{transform_indices = @transform_0, window_bounds = array<i64: 1, 256, 128>}, {transform_indices = @transform_1, window_bounds = array<i64: 1, 128, 128>}, {transform_indices = @transform_2, window_bounds = array<i64: 256, 256>}, {pipeline_mode = #tpu.pipeline_mode<synchronous>, transform_indices = @transform_3, window_bounds = array<i64: 256, 128>}]} {
    %c0_i32 = arith.constant 0 : i32
    %0 = arith.cmpi eq, %arg0, %c0_i32 : i32
    %c0_i32_0 = arith.constant 0 : i32
    %1 = arith.cmpi eq, %arg1, %c0_i32_0 : i32
    %2 = arith.andi %0, %1 : i1
    %c0_i32_1 = arith.constant 0 : i32
    %3 = arith.cmpi eq, %arg2, %c0_i32_1 : i32
    %4 = arith.andi %2, %3 : i1
    %5 = arith.extui %4 : i1 to i32
    %c0_i32_2 = arith.constant 0 : i32
    %6 = arith.cmpi ne, %5, %c0_i32_2 : i32
    scf.if %6 {
      %c0_20 = arith.constant 0 : index
      %c0_21 = arith.constant 0 : index
      %c0_22 = arith.constant 0 : index
      %36 = vector.load %arg3[%c0_20, %c0_21, %c0_22] : memref<1x256x128xf32, #tpu.memory_space<vmem>>, vector<1x256x128xf32>
      %37 = vector.shape_cast %36 : vector<1x256x128xf32> to vector<256x128xf32>
      %c0_23 = arith.constant 0 : index
      %c0_24 = arith.constant 0 : index
      %38 = vector.load %arg7[%c0_23, %c0_24] : memref<256x128xf32, #tpu.memory_space<vmem>>, vector<256x128xf32>
      tpu.vector_store %arg7[%c0_23, %c0_24], %37 {strides = array<i32>} : memref<256x128xf32, #tpu.memory_space<vmem>>, vector<256x128xf32>,
    } else {
    }
    %c0_i32_3 = arith.constant 0 : i32
    %7 = arith.cmpi eq, %arg1, %c0_i32_3 : i32
    %c0_i32_4 = arith.constant 0 : i32
    %8 = arith.cmpi eq, %arg2, %c0_i32_4 : i32
    %9 = arith.andi %7, %8 : i1
    %10 = arith.extui %9 : i1 to i32
    %c0_i32_5 = arith.constant 0 : i32
    %11 = arith.cmpi ne, %10, %c0_i32_5 : i32
    scf.if %11 {
      %c0_i32_20 = arith.constant 0 : i32
      %36 = arith.cmpi sgt, %arg0, %c0_i32_20 : i32
      %37 = arith.extui %36 : i1 to i32
      %38 = arith.sitofp %37 : i32 to f32
      %cst_21 = arith.constant 5.000000e-01 : f32
      %39 = arith.mulf %cst_21, %38 : f32
      %cst_22 = arith.constant 1.000000e+00 : f32
      %40 = arith.subf %cst_22, %39 : f32
      %c0_23 = arith.constant 0 : index
      %c0_24 = arith.constant 0 : index
      %41 = vector.load %arg7[%c0_23, %c0_24] : memref<256x128xf32, #tpu.memory_space<vmem>>, vector<256x128xf32>
      %42 = vector.broadcast %40 : f32 to vector<256x128xf32>
      %43 = arith.mulf %42, %41 : vector<256x128xf32>
      %c0_25 = arith.constant 0 : index
      %c0_26 = arith.constant 0 : index
      %c0_27 = arith.constant 0 : index
      %44 = vector.load %arg3[%c0_25, %c0_26, %c0_27] : memref<1x256x128xf32, #tpu.memory_space<vmem>>, vector<1x256x128xf32>
      %45 = vector.shape_cast %44 : vector<1x256x128xf32> to vector<256x128xf32>
      %46 = vector.broadcast %39 : f32 to vector<256x128xf32>
      %47 = arith.mulf %46, %45 : vector<256x128xf32>
      %48 = arith.addf %43, %47 : vector<256x128xf32>
      %49 = arith.truncf %48 : vector<256x128xf32> to vector<256x128xbf16>
      %c0_28 = arith.constant 0 : index
      %c0_29 = arith.constant 0 : index
      %c0_30 = arith.constant 0 : index
      %50 = vector.load %arg4[%c0_28, %c0_29, %c0_30] : memref<1x128x128xf32, #tpu.memory_space<vmem>>, vector<1x128x128xf32>
      %51 = vector.shape_cast %50 : vector<1x128x128xf32> to vector<128x128xf32>
      %52 = arith.truncf %51 : vector<128x128xf32> to vector<128x128xbf16>
      %cst_31 = arith.constant dense<0.000000e+00> : vector<256x128xf32>
      %53 = tpu.matmul %49, %52, %cst_31 {dimension_numbers = #tpu.dot_dimension_numbers<[1], [0], [0], [1], [0, 0, 1, 1], [], []>} : vector<256x128xbf16>, vector<128x128xbf16>, vector<256x128xf32> -> vector<256x128xf32>
      %54 = arith.truncf %53 : vector<256x128xf32> to vector<256x128xbf16>
      %c0_32 = arith.constant 0 : index
      %c0_33 = arith.constant 0 : index
      %55 = vector.load %arg8[%c0_32, %c0_33] : memref<256x128xbf16, #tpu.memory_space<vmem>>, vector<256x128xbf16>
      tpu.vector_store %arg8[%c0_32, %c0_33], %54 {strides = array<i32>} : memref<256x128xbf16, #tpu.memory_space<vmem>>, vector<256x128xbf16>,
    } else {
    }
    %c0_i32_6 = arith.constant 0 : i32
    %12 = arith.cmpi eq, %arg2, %c0_i32_6 : i32
    %13 = arith.extui %12 : i1 to i32
    %c0_i32_7 = arith.constant 0 : i32
    %14 = arith.cmpi ne, %13, %c0_i32_7 : i32
    scf.if %14 {
      %cst_20 = arith.constant 0.000000e+00 : f32
      %36 = vector.broadcast %cst_20 : f32 to vector<256x128xf32>
      %c0_21 = arith.constant 0 : index
      %c0_22 = arith.constant 0 : index
      %37 = vector.load %arg9[%c0_21, %c0_22] : memref<256x128xf32, #tpu.memory_space<vmem>>, vector<256x128xf32>
      tpu.vector_store %arg9[%c0_21, %c0_22], %36 {strides = array<i32>} : memref<256x128xf32, #tpu.memory_space<vmem>>, vector<256x128xf32>,
    } else {
    }
    %c256_i32 = arith.constant 256 : i32
    %15 = arith.muli %arg2, %c256_i32 : i32
    %16 = tpu.assume_multiple %15, 256 : i32
    %c0 = arith.constant 0 : index
    %c0_8 = arith.constant 0 : index
    %17 = vector.load %arg9[%c0, %c0_8] : memref<256x128xf32, #tpu.memory_space<vmem>>, vector<256x128xf32>
    %c0_9 = arith.constant 0 : index
    %c0_10 = arith.constant 0 : index
    %18 = vector.load %arg5[%c0_9, %c0_10] : memref<256x256xbf16, #tpu.memory_space<vmem>>, vector<256x256xbf16>
    %19 = arith.index_cast %16 : i32 to index
    %c0_11 = arith.constant 0 : index
    %20 = vector.load %arg8[%19, %c0_11] : memref<256x128xbf16, #tpu.memory_space<vmem>>, vector<256x128xbf16>
    %cst = arith.constant dense<0.000000e+00> : vector<256x128xf32>
    %21 = tpu.matmul %18, %20, %cst {dimension_numbers = #tpu.dot_dimension_numbers<[1], [0], [0], [1], [0, 0, 1, 1], [], []>} : vector<256x256xbf16>, vector<256x128xbf16>, vector<256x128xf32> -> vector<256x128xf32>
    %22 = arith.addf %17, %21 : vector<256x128xf32>
    %c0_12 = arith.constant 0 : index
    %c0_13 = arith.constant 0 : index
    %23 = vector.load %arg9[%c0_12, %c0_13] : memref<256x128xf32, #tpu.memory_space<vmem>>, vector<256x128xf32>
    tpu.vector_store %arg9[%c0_12, %c0_13], %22 {strides = array<i32>} : memref<256x128xf32, #tpu.memory_space<vmem>>, vector<256x128xf32>,
    %c256_i32_14 = arith.constant 256 : i32
    %24 = arith.muli %arg1, %c256_i32_14 : i32
    %25 = tpu.assume_multiple %24, 256 : i32
    %c0_i32_15 = arith.constant 0 : i32
    %26 = arith.cmpi eq, %arg2, %c0_i32_15 : i32
    %c4_i32 = arith.constant 4 : i32
    %27 = arith.cmpi slt, %arg0, %c4_i32 : i32
    %28 = arith.andi %26, %27 : i1
    %29 = arith.extui %28 : i1 to i32
    %c0_i32_16 = arith.constant 0 : i32
    %30 = arith.cmpi ne, %29, %c0_i32_16 : i32
    scf.if %30 {
      %c0_20 = arith.constant 0 : index
      %c0_21 = arith.constant 0 : index
      %36 = vector.load %arg9[%c0_20, %c0_21] : memref<256x128xf32, #tpu.memory_space<vmem>>, vector<256x128xf32>
      %cst_22 = arith.constant 0.000000e+00 : f32
      %37 = vector.broadcast %cst_22 : f32 to vector<256x128xf32>
      %38 = arith.maximumf %36, %37 : vector<256x128xf32>
      %39 = arith.index_cast %25 : i32 to index
      %c0_23 = arith.constant 0 : index
      %40 = vector.load %arg7[%39, %c0_23] : memref<256x128xf32, #tpu.memory_space<vmem>>, vector<256x128xf32>
      tpu.vector_store %arg7[%39, %c0_23], %38 {strides = array<i32>} : memref<256x128xf32, #tpu.memory_space<vmem>>, vector<256x128xf32>,
    } else {
    }
    %c0_i32_17 = arith.constant 0 : i32
    %31 = arith.cmpi eq, %arg2, %c0_i32_17 : i32
    %c4_i32_18 = arith.constant 4 : i32
    %32 = arith.cmpi eq, %arg0, %c4_i32_18 : i32
    %33 = arith.andi %31, %32 : i1
    %34 = arith.extui %33 : i1 to i32
    %c0_i32_19 = arith.constant 0 : i32
    %35 = arith.cmpi ne, %34, %c0_i32_19 : i32
    scf.if %35 {
      %c0_20 = arith.constant 0 : index
      %c0_21 = arith.constant 0 : index
      %36 = vector.load %arg9[%c0_20, %c0_21] : memref<256x128xf32, #tpu.memory_space<vmem>>, vector<256x128xf32>
      %37 = tpu.iota {dimensions = array<i32: 1>} : vector<256x128xi32>
      %c8_i32 = arith.constant 8 : i32
      %38 = vector.broadcast %c8_i32 : i32 to vector<256x128xi32>
      %39 = arith.cmpi slt, %37, %38 : vector<256x128xi32>
      %cst_22 = arith.constant -1.000000e+30 : f32
      %40 = vector.broadcast %cst_22 : f32 to vector<256x128xf32>
      %41 = arith.select %39, %36, %40 : vector<256x128xi1>, vector<256x128xf32>
      %cst_23 = arith.constant dense<0xFF800000> : vector<256xf32>
      %42 = vector.multi_reduction <maximumf>, %41, %cst_23 [1] : vector<256x128xf32> to vector<256xf32>
      %43 = vector.shape_cast %42 : vector<256xf32> to vector<256x1xf32>
      %44 = vector.broadcast %43 : vector<256x1xf32> to vector<256x128xf32>
      %45 = arith.subf %41, %44 : vector<256x128xf32>
      %46 = math.exp %45 : vector<256x128xf32>
      %cst_24 = arith.constant dense<0.000000e+00> : vector<256xf32>
      %47 = vector.multi_reduction <add>, %46, %cst_24 [1] : vector<256x128xf32> to vector<256xf32>
      %48 = vector.shape_cast %47 : vector<256xf32> to vector<256x1xf32>
      %49 = tpu.reciprocal %48 {approx = true} : vector<256x1xf32> -> vector<256x1xf32>
      %50 = vector.broadcast %49 : vector<256x1xf32> to vector<256x128xf32>
      %51 = arith.mulf %46, %50 : vector<256x128xf32>
      %52 = arith.index_cast %25 : i32 to index
      %c0_25 = arith.constant 0 : index
      %53 = vector.load %arg6[%52, %c0_25] : memref<256x128xf32, #tpu.memory_space<vmem>>, vector<256x128xf32>
      tpu.vector_store %arg6[%52, %c0_25], %51 {strides = array<i32>} : memref<256x128xf32, #tpu.memory_space<vmem>>, vector<256x128xf32>,
    } else {
    }
    return
  }
  func.func @transform_0(%arg0: i32, %arg1: i32, %arg2: i32) -> (i32, i32, i32) {
    %c0_i32 = arith.constant 0 : i32
    %c0_i32_0 = arith.constant 0 : i32
    %c0_i32_1 = arith.constant 0 : i32
    return %arg0, %c0_i32, %c0_i32_0 : i32, i32, i32
  }
  func.func @transform_1(%arg0: i32, %arg1: i32, %arg2: i32) -> (i32, i32, i32) {
    %c0_i32 = arith.constant 0 : i32
    %c0_i32_0 = arith.constant 0 : i32
    %c0_i32_1 = arith.constant 0 : i32
    return %arg0, %c0_i32, %c0_i32_0 : i32, i32, i32
  }
  func.func @transform_2(%arg0: i32, %arg1: i32, %arg2: i32) -> (i32, i32) {
    %c0_i32 = arith.constant 0 : i32
    return %arg1, %arg2 : i32, i32
  }
  func.func @transform_3(%arg0: i32, %arg1: i32, %arg2: i32) -> (i32, i32) {
    %c0_i32 = arith.constant 0 : i32
    %c0_i32_0 = arith.constant 0 : i32
    %c0_i32_1 = arith.constant 0 : i32
    return %c0_i32, %c0_i32_0 : i32, i32
  }
}

</mosaic_0001>

<llo_original>
// kernel: tpu_custom_call.1
$region0: #{tpu_custom_call.1}
  #allocation0 [shape = 'u32[]', space=smem, size = 0x4, offset = 0x4, fixed_abs, tag = 'smem constant byte address 0x4 - core index']
  #allocation1 [shape = 'u32[144,128]{1,0:T(1,128)}', space=vmem, size = 0x12000, scoped, tag = 'internal scratch']
  #allocation2 [shape = 'f32[256,128]{1,0:T(8,128)}', space=vmem, size = 0x20000, scoped, tag = 'scratch operand']
  #allocation3 [shape = 'bf16[256,128]{1,0:T(16,128)(2,1)}', space=vmem, size = 0x10000, scoped, tag = 'scratch operand']
  #allocation4 [shape = 'f32[256,128]{1,0:T(8,128)}', space=vmem, size = 0x20000, scoped, tag = 'scratch operand']
  %s0 = inlined_call_operand.hbm [shape: f32[5,256,128], index: 0, kind: input, shape index: {}]
  %s1 = inlined_call_operand.hbm [shape: f32[5,128,128], index: 1, kind: input, shape index: {}]
  %s2 = inlined_call_operand.hbm [shape: bf16[256,256], index: 2, kind: input, shape index: {}]
  %s3 = inlined_call_operand.hbm [shape: f32[256,128], index: 3, kind: output, shape index: {}]
  %s4 = sld [smem:[#allocation0]]
  $region77: #{tpu_custom_call.1} parent=0
    _
  %s6 = ssub.s32 1, %s4
  %s7 = scalar_select 0, %s6, %s4
  $region1: #{tpu_custom_call.1} parent=0
    #allocation5 [shape = 'u8[262144]{0}', space=vmem, size = 0x40000, scoped, tag = 'input window, operand 0']
    #allocation6 [shape = 's32[2]{0}', space=sflag, size = 0x8, scoped, tag = 'scoped memory for tpu_custom_call.1']
    #allocation7 [shape = 's32[2]{0}', space=sflag, size = 0x8, scoped, tag = 'scoped memory for tpu_custom_call.1']
    #allocation8 [shape = 'u8[131072]{0}', space=vmem, size = 0x20000, scoped, tag = 'input window, operand 1']
    #allocation9 [shape = 's32[2]{0}', space=sflag, size = 0x8, scoped, tag = 'scoped memory for tpu_custom_call.1']
    #allocation10 [shape = 'u8[131072]{0}', space=vmem, size = 0x20000, scoped, tag = 'input window, operand 2, single buffered']
    #allocation11 [shape = 'u8[131072]{0}', space=vmem, size = 0x20000, scoped, tag = 'output window, operand 0, single buffered']
    %8 = vsyncpa [#allocation6], 0
    %s9 = scalar_lea.sflag [#allocation6], 1
    %10 = vsyncpa %s9, 0
    %11 = vsyncpa [#allocation9], 0
    %s12 = scalar_lea.sflag [#allocation9], 1
    %13 = vsyncpa %s12, 0
    %14 = vsyncpa [#allocation7], 0
    loop: start=0, step=1, limit=7
    $region2: #{tpu_custom_call.1} parent=1 // loop_pre_header
      _
    $region3: #{tpu_custom_call.1} parent=1 // loop_header
      %s16 = sphi 0, %s20
      %p17 = scmp.ge.s32.totalorder %s16, 7
      %s23 = sphi 0, %s42
      %s24 = sphi 0, %s38
      %s25 = sphi 0, %s34
      %s26 = sphi 0, %s23
      %s27 = sphi 0, %s24
      %s28 = sphi 0, %s25
      %s29 = sphi 0, %s26
      %s30 = sphi 0, %s27
      %s31 = sphi 0, %s28
      %s45 = sphi 0, %s47
      %s48 = sphi 0, %s45
      %s49 = sphi 0, %s48
      %s65 = sphi 0, %s49
      %s71 = sphi 0, %s73
      %s74 = sphi 0, %s71
      %s75 = sphi 0, %s74
      %s91 = sphi 0, %s75
      %s99 = sphi 0, %s101
      %s102 = sphi 0, %s99
      %s103 = sphi 0, %s102
      %s119 = sphi 0, %s103
      %s123 = sphi 0, %s123
      %s125 = sphi 0, %s123
      %s126 = sphi 0, %s125
      %s140 = sphi 0, %s126
    $region4: #{tpu_custom_call.1} parent=1 // loop_header_branch
      %19 = sbr.rel (%p17) target = $region8
    $region5: #{tpu_custom_call.1} parent=1 // loop_body
      %s21 = ssub.s32 %s16, 1
      %s22 = ssub.s32 %s16, 2
      %s32 = sadd.s32 1, %s25
      %p33 = scmp.ge.s32.totalorder %s32, 1
      %s34 = scalar_select %p33, 0, %s32
      %s35 = sadd.s32 1, %s24
      %s36 = scalar_select %p33, %s35, %s24
      %p37 = scmp.ge.s32.totalorder %s36, 1
      %s38 = scalar_select %p37, 0, %s36
      %s39 = sadd.s32 1, %s23
      %s40 = scalar_select %p37, %s39, %s23
      %p41 = scmp.ge.s32.totalorder %s40, 5
      %s42 = scalar_select %p41, 0, %s40
      %s43 = ssub.s32 %s23, %s42
      %p44 = scmp.eq.s32.totalorder %s43, 0
      %s46 = sadd.s32 %s45, 1
      %s47 = scalar_select %p44, %s45, %s46
      %p50 = pneg %p44
      %p51 = scmp.eq.s32.totalorder %s16, 4
      %p52 = por %p50, %p51
      %p53 = scmp.ne.s32.totalorder %s45, %s48
      %p54 = scmp.eq.s32.totalorder %s16, 0
      %p55 = por %p53, %p54
      %p56 = scmp.ne.s32.totalorder %s45, %s48
      %p57 = scmp.eq.s32.totalorder %s21, 4
      %p58 = por %p56, %p57
      %p59 = scmp.ne.s32.totalorder %s48, %s49
      %p60 = scmp.eq.s32.totalorder %s21, 0
      %p61 = por %p59, %p60
      %p62 = scmp.ne.s32.totalorder %s48, %s49
      %p63 = scmp.eq.s32.totalorder %s22, 4
      %p64 = por %p62, %p63
      %p66 = scmp.ne.s32.totalorder %s49, %s65
      %p67 = scmp.eq.s32.totalorder %s22, 0
      %p68 = por %p66, %p67
      %s69 = ssub.s32 %s23, %s42
      %p70 = scmp.eq.s32.totalorder %s69, 0
      %s72 = sadd.s32 %s71, 1
      %s73 = scalar_select %p70, %s71, %s72
      %p76 = pneg %p70
      %p77 = scmp.eq.s32.totalorder %s16, 4
      %p78 = por %p76, %p77
      %p79 = scmp.ne.s32.totalorder %s71, %s74
      %p80 = scmp.eq.s32.totalorder %s16, 0
      %p81 = por %p79, %p80
      %p82 = scmp.ne.s32.totalorder %s71, %s74
      %p83 = scmp.eq.s32.totalorder %s21, 4
      %p84 = por %p82, %p83
      %p85 = scmp.ne.s32.totalorder %s74, %s75
      %p86 = scmp.eq.s32.totalorder %s21, 0
      %p87 = por %p85, %p86
      %p88 = scmp.ne.s32.totalorder %s74, %s75
      %p89 = scmp.eq.s32.totalorder %s22, 4
      %p90 = por %p88, %p89
      %p92 = scmp.ne.s32.totalorder %s75, %s91
      %p93 = scmp.eq.s32.totalorder %s22, 0
      %p94 = por %p92, %p93
      %s95 = ssub.s32 %s24, %s38
      %s96 = ssub.s32 %s25, %s34
      %s97 = sor.u32 %s95, %s96
      %p98 = scmp.eq.s32.totalorder %s97, 0
      %s100 = sadd.s32 %s99, 1
      %s101 = scalar_select %p98, %s99, %s100
      %p104 = pneg %p98
      %p105 = scmp.eq.s32.totalorder %s16, 4
      %p106 = por %p104, %p105
      %p107 = scmp.ne.s32.totalorder %s99, %s102
      %p108 = scmp.eq.s32.totalorder %s16, 0
      %p109 = por %p107, %p108
      %p110 = scmp.ne.s32.totalorder %s99, %s102
      %p111 = scmp.eq.s32.totalorder %s21, 4
      %p112 = por %p110, %p111
      %p113 = scmp.ne.s32.totalorder %s102, %s103
      %p114 = scmp.eq.s32.totalorder %s21, 0
      %p115 = por %p113, %p114
      %p116 = scmp.ne.s32.totalorder %s102, %s103
      %p117 = scmp.eq.s32.totalorder %s22, 4
      %p118 = por %p116, %p117
      %p120 = scmp.ne.s32.totalorder %s103, %s119
      %p121 = scmp.eq.s32.totalorder %s22, 0
      %p122 = por %p120, %p121
      %s124 = sadd.s32 %s123, 1
      %p127 = scmp.eq.s32.totalorder %s16, 4
      %p128 = scmp.ne.s32.totalorder %s123, %s125
      %p129 = scmp.eq.s32.totalorder %s16, 0
      %p130 = por %p128, %p129
      %p131 = scmp.ne.s32.totalorder %s123, %s125
      %p132 = scmp.eq.s32.totalorder %s21, 4
      %p133 = por %p131, %p132
      %p134 = scmp.ne.s32.totalorder %s125, %s126
      %p135 = scmp.eq.s32.totalorder %s21, 0
      %p136 = por %p134, %p135
      %p137 = scmp.ne.s32.totalorder %s125, %s126
      %p138 = scmp.eq.s32.totalorder %s22, 4
      %p139 = por %p137, %p138
      %p141 = scmp.ne.s32.totalorder %s126, %s140
      %p142 = scmp.eq.s32.totalorder %s22, 0
      %p143 = por %p141, %p142
      %p144 = scmp.le.s32.totalorder 1, %s16
      %p145 = scmp.lt.s32.totalorder %s16, 6
      %p146 = pnand %p144, %p145
      %p147 = pneg %p146
      // Predicated region
      $region9: #{tpu_custom_call.1} parent=5 // pred_check
        _
      $region10: #{tpu_custom_call.1} parent=5 // pred_check_branch
        %149 = sbr.rel (%p146) target = $region12
      $region11: #{tpu_custom_call.1} parent=5 // pred_region
        %s150 = ssub.s32 %s16, 1
        // Predicated region
        $region13: #{tpu_custom_call.1} parent=11 // pred_check
          %p151 = pneg %p115
        $region14: #{tpu_custom_call.1} parent=11 // pred_check_branch
          %153 = sbr.rel (%p151) target = $region16
        $region15: #{tpu_custom_call.1} parent=11 // pred_region
          %s154 = smul.u32 32, %s27
          %s155 = smul.u32 2, %s28
          %s157 = ssub.s32 4096, 4096
          %158 = vsyncadd [#allocation9], %s157
          %s159 = smul.addr %s154, 2
          %s160 = sadd.s32 %s155, %s159
          %s161 = smul.addr %s160, 64
          %s162 = scalar_lea.hbm %s2, %s161
          %s163 = sshll.u32 [#allocation10], 4
          %s164 = int_to_ptr.vmem [resolvable:$true] %s163
          %169 = dma.hbm_to_vmem [thread:$0]  %s162, 4096, %s164, [#allocation9], 128, 128, 8
        $region16: #{tpu_custom_call.1} parent=11 // pred_fallthru
          _
      $region12: #{tpu_custom_call.1} parent=5 // pred_fallthru
        _
      %p170 = scmp.lt.s32.totalorder %s16, 5
      // Predicated region
      $region17: #{tpu_custom_call.1} parent=5 // pred_check
        %p171 = pneg %p170
      $region18: #{tpu_custom_call.1} parent=5 // pred_check_branch
        %173 = sbr.rel (%p171) target = $region20
      $region19: #{tpu_custom_call.1} parent=5 // pred_region
        // Predicated region
        $region21: #{tpu_custom_call.1} parent=19 // pred_check
          %p174 = pneg %p55
        $region22: #{tpu_custom_call.1} parent=19 // pred_check_branch
          %176 = sbr.rel (%p174) target = $region24
        $region23: #{tpu_custom_call.1} parent=19 // pred_region
          %s177 = sand.u32 %s45, 1
          %s178 = scalar_lea.sflag [#allocation6], %s177
          %s179 = sand.u32 %s45, 1
          %s180 = smul.addr %s179, 256
          %s181 = scalar_lea.vmem [#allocation5], %s180
          %s183 = ssub.s32 4096, 4096
          %184 = vsyncadd %s178, %s183
          %s185 = smul.addr %s23, 32
          %s186 = smul.addr %s185, 128
          %s187 = scalar_lea.hbm %s0, %s186
          %s188 = sshll.u32 %s181, 4
          %s189 = int_to_ptr.vmem [resolvable:$true] %s188
          %194 = dma.hbm_to_vmem [thread:$0]  %s187, 4096, %s189, %s178, 128, 128, 8
        $region24: #{tpu_custom_call.1} parent=19 // pred_fallthru
          _
        // Predicated region
        $region25: #{tpu_custom_call.1} parent=19 // pred_check
          %p195 = pneg %p81
        $region26: #{tpu_custom_call.1} parent=19 // pred_check_branch
          %197 = sbr.rel (%p195) target = $region28
        $region27: #{tpu_custom_call.1} parent=19 // pred_region
          %s198 = sand.u32 %s16, 1
          %s199 = scalar_lea.sflag [#allocation9], %s198
          %s200 = sand.u32 %s71, 1
          %s201 = smul.addr %s200, 128
          %s202 = scalar_lea.vmem [#allocation8], %s201
          %s204 = ssub.s32 2048, 2048
          %205 = vsyncadd %s199, %s204
          %s206 = smul.addr %s23, 16
          %s207 = smul.addr %s206, 128
          %s208 = scalar_lea.hbm %s1, %s207
          %s209 = sshll.u32 %s202, 4
          %s210 = int_to_ptr.vmem [resolvable:$true] %s209
          %215 = dma.hbm_to_vmem [thread:$0]  %s208, 2048, %s210, %s199, 128, 128, 8
        $region28: #{tpu_custom_call.1} parent=19 // pred_fallthru
          _
      $region20: #{tpu_custom_call.1} parent=5 // pred_fallthru
        _
      %p216 = scmp.le.s32.totalorder 1, %s16
      %p217 = scmp.lt.s32.totalorder %s16, 6
      %p218 = pnand %p216, %p217
      %p219 = pneg %p218
      // Predicated region
      $region29: #{tpu_custom_call.1} parent=5 // pred_check
        _
      $region30: #{tpu_custom_call.1} parent=5 // pred_check_branch
        %221 = sbr.rel (%p218) target = $region32
      $region31: #{tpu_custom_call.1} parent=5 // pred_region
        %s222 = ssub.s32 %s16, 1
        %s223 = sand.u32 %s48, 1
        %s224 = scalar_lea.sflag [#allocation6], %s223
        %s225 = sand.u32 %s48, 1
        %s226 = smul.addr %s225, 256
        %s227 = scalar_lea.vmem [#allocation5], %s226
        // Predicated region
        $region33: #{tpu_custom_call.1} parent=31 // pred_check
          %p228 = pneg %p61
        $region34: #{tpu_custom_call.1} parent=31 // pred_check_branch
          %230 = sbr.rel (%p228) target = $region36
        $region35: #{tpu_custom_call.1} parent=31 // pred_region
          %231 = dma.done %s224, 4096
        $region36: #{tpu_custom_call.1} parent=31 // pred_fallthru
          _
        %s232 = sand.u32 %s21, 1
        %s233 = scalar_lea.sflag [#allocation9], %s232
        %s234 = sand.u32 %s74, 1
        %s235 = smul.addr %s234, 128
        %s236 = scalar_lea.vmem [#allocation8], %s235
        // Predicated region
        $region37: #{tpu_custom_call.1} parent=31 // pred_check
          %p237 = pneg %p87
        $region38: #{tpu_custom_call.1} parent=31 // pred_check_branch
          %239 = sbr.rel (%p237) target = $region40
        $region39: #{tpu_custom_call.1} parent=31 // pred_region
          %240 = dma.done %s233, 2048
        $region40: #{tpu_custom_call.1} parent=31 // pred_fallthru
          _
        // Predicated region
        $region41: #{tpu_custom_call.1} parent=31 // pred_check
          %p241 = pneg %p115
        $region42: #{tpu_custom_call.1} parent=31 // pred_check_branch
          %243 = sbr.rel (%p241) target = $region44
        $region43: #{tpu_custom_call.1} parent=31 // pred_region
          %244 = dma.done [#allocation9], 4096
        $region44: #{tpu_custom_call.1} parent=31 // pred_fallthru
          _
        %s245 = sand.u32 %s48, 1
        %s246 = scalar_lea.sflag [#allocation6], %s245
        %s247 = sand.u32 %s48, 1
        %s248 = smul.addr %s247, 256
        %s249 = scalar_lea.vmem [#allocation5], %s248
        %p250 = pneg %p61
        %p251 = pneg %p58
        %s252 = sand.u32 %s21, 1
        %s253 = scalar_lea.sflag [#allocation9], %s252
        %s254 = sand.u32 %s74, 1
        %s255 = smul.addr %s254, 128
        %s256 = scalar_lea.vmem [#allocation8], %s255
        %p257 = pneg %p87
        %p258 = pneg %p84
        %p259 = pneg %p115
        %p260 = pneg %p112
        %p261 = pneg %p136
        %p262 = pneg %p133
        %s263 = smul.u32 32, %s27
        %s264 = smul.u32 2, %s28
        %p266 = scmp.eq.s32.totalorder %s26, 0
        %p267 = scmp.eq.s32.totalorder %s27, 0
        %p268 = pnand %p266, %p267
        %p269 = pneg %p268
        %p270 = scmp.eq.s32.totalorder %s28, 0
        %p271 = pnand %p269, %p270
        %p272 = pneg %p271
        // Predicated region
        $region45: #{tpu_custom_call.1} parent=31 // pred_check
          _
        $region46: #{tpu_custom_call.1} parent=31 // pred_check_branch
          %274 = sbr.rel (%p271) target = $region48
        $region47: #{tpu_custom_call.1} parent=31 // pred_region
          %v275 = vld [vmem:[%s227] sm:$0xff]
          %v276 = vld [vmem:[%s227 + $0x8] sm:$0xff]
          %v277 = vld [vmem:[%s227 + $0x10] sm:$0xff]
          %v278 = vld [vmem:[%s227 + $0x18] sm:$0xff]
          %v279 = vld [vmem:[%s227 + $0x20] sm:$0xff]
          %v280 = vld [vmem:[%s227 + $0x28] sm:$0xff]
          %v281 = vld [vmem:[%s227 + $0x30] sm:$0xff]
          %v282 = vld [vmem:[%s227 + $0x38] sm:$0xff]
          %v283 = vld [vmem:[%s227 + $0x40] sm:$0xff]
          %v284 = vld [vmem:[%s227 + $0x48] sm:$0xff]
          %v285 = vld [vmem:[%s227 + $0x50] sm:$0xff]
          %v286 = vld [vmem:[%s227 + $0x58] sm:$0xff]
          %v287 = vld [vmem:[%s227 + $0x60] sm:$0xff]
          %v288 = vld [vmem:[%s227 + $0x68] sm:$0xff]
          %v289 = vld [vmem:[%s227 + $0x70] sm:$0xff]
          %v290 = vld [vmem:[%s227 + $0x78] sm:$0xff]
          %v291 = vld [vmem:[%s227 + $0x80] sm:$0xff]
          %v292 = vld [vmem:[%s227 + $0x88] sm:$0xff]
          %v293 = vld [vmem:[%s227 + $0x90] sm:$0xff]
          %v294 = vld [vmem:[%s227 + $0x98] sm:$0xff]
          %v295 = vld [vmem:[%s227 + $0xa0] sm:$0xff]
          %v296 = vld [vmem:[%s227 + $0xa8] sm:$0xff]
          %v297 = vld [vmem:[%s227 + $0xb0] sm:$0xff]
          %v298 = vld [vmem:[%s227 + $0xb8] sm:$0xff]
          %v299 = vld [vmem:[%s227 + $0xc0] sm:$0xff]
          %v300 = vld [vmem:[%s227 + $0xc8] sm:$0xff]
          %v301 = vld [vmem:[%s227 + $0xd0] sm:$0xff]
          %v302 = vld [vmem:[%s227 + $0xd8] sm:$0xff]
          %v303 = vld [vmem:[%s227 + $0xe0] sm:$0xff]
          %v304 = vld [vmem:[%s227 + $0xe8] sm:$0xff]
          %v305 = vld [vmem:[%s227 + $0xf0] sm:$0xff]
          %v306 = vld [vmem:[%s227 + $0xf8] sm:$0xff]
          %307 = vst [vmem:[#allocation2] sm:$0xff] %v275
          %308 = vst [vmem:[#allocation2 + $0x8] sm:$0xff] %v276
          %309 = vst [vmem:[#allocation2 + $0x10] sm:$0xff] %v277
          %310 = vst [vmem:[#allocation2 + $0x18] sm:$0xff] %v278
          %311 = vst [vmem:[#allocation2 + $0x20] sm:$0xff] %v279
          %312 = vst [vmem:[#allocation2 + $0x28] sm:$0xff] %v280
          %313 = vst [vmem:[#allocation2 + $0x30] sm:$0xff] %v281
          %314 = vst [vmem:[#allocation2 + $0x38] sm:$0xff] %v282
          %315 = vst [vmem:[#allocation2 + $0x40] sm:$0xff] %v283
          %316 = vst [vmem:[#allocation2 + $0x48] sm:$0xff] %v284
          %317 = vst [vmem:[#allocation2 + $0x50] sm:$0xff] %v285
          %318 = vst [vmem:[#allocation2 + $0x58] sm:$0xff] %v286
          %319 = vst [vmem:[#allocation2 + $0x60] sm:$0xff] %v287
          %320 = vst [vmem:[#allocation2 + $0x68] sm:$0xff] %v288
          %321 = vst [vmem:[#allocation2 + $0x70] sm:$0xff] %v289
          %322 = vst [vmem:[#allocation2 + $0x78] sm:$0xff] %v290
          %323 = vst [vmem:[#allocation2 + $0x80] sm:$0xff] %v291
          %324 = vst [vmem:[#allocation2 + $0x88] sm:$0xff] %v292
          %325 = vst [vmem:[#allocation2 + $0x90] sm:$0xff] %v293
          %326 = vst [vmem:[#allocation2 + $0x98] sm:$0xff] %v294
          %327 = vst [vmem:[#allocation2 + $0xa0] sm:$0xff] %v295
          %328 = vst [vmem:[#allocation2 + $0xa8] sm:$0xff] %v296
          %329 = vst [vmem:[#allocation2 + $0xb0] sm:$0xff] %v297
          %330 = vst [vmem:[#allocation2 + $0xb8] sm:$0xff] %v298
          %331 = vst [vmem:[#allocation2 + $0xc0] sm:$0xff] %v299
          %332 = vst [vmem:[#allocation2 + $0xc8] sm:$0xff] %v300
          %333 = vst [vmem:[#allocation2 + $0xd0] sm:$0xff] %v301
          %334 = vst [vmem:[#allocation2 + $0xd8] sm:$0xff] %v302
          %335 = vst [vmem:[#allocation2 + $0xe0] sm:$0xff] %v303
          %336 = vst [vmem:[#allocation2 + $0xe8] sm:$0xff] %v304
          %337 = vst [vmem:[#allocation2 + $0xf0] sm:$0xff] %v305
          %338 = vst [vmem:[#allocation2 + $0xf8] sm:$0xff] %v306
        $region48: #{tpu_custom_call.1} parent=31 // pred_fallthru
          _
        %p339 = pnand %p267, %p270
        %p340 = pneg %p339
        // Predicated region
        $region49: #{tpu_custom_call.1} parent=31 // pred_check
          _
        $region50: #{tpu_custom_call.1} parent=31 // pred_check_branch
          %342 = sbr.rel (%p339) target = $region52
        $region51: #{tpu_custom_call.1} parent=31 // pred_region
          %p343 = scmp.gt.s32.totalorder %s26, 0
          %s344 = scalar_select %p343, 1, 0
          %s345 = scvt.s32.f32 %s344
          %s346 = smul.f32 %s345, 0.5
          %s347 = ssub.f32 1.0, %s346
          %v348 = vld [vmem:[#allocation2] sm:$0xff]
          %v349 = vld [vmem:[#allocation2 + $0x8] sm:$0xff]
          %v350 = vld [vmem:[#allocation2 + $0x10] sm:$0xff]
          %v351 = vld [vmem:[#allocation2 + $0x18] sm:$0xff]
          %v352 = vld [vmem:[#allocation2 + $0x20] sm:$0xff]
          %v353 = vld [vmem:[#allocation2 + $0x28] sm:$0xff]
          %v354 = vld [vmem:[#allocation2 + $0x30] sm:$0xff]
          %v355 = vld [vmem:[#allocation2 + $0x38] sm:$0xff]
          %v356 = vld [vmem:[#allocation2 + $0x40] sm:$0xff]
          %v357 = vld [vmem:[#allocation2 + $0x48] sm:$0xff]
          %v358 = vld [vmem:[#allocation2 + $0x50] sm:$0xff]
          %v359 = vld [vmem:[#allocation2 + $0x58] sm:$0xff]
          %v360 = vld [vmem:[#allocation2 + $0x60] sm:$0xff]
          %v361 = vld [vmem:[#allocation2 + $0x68] sm:$0xff]
          %v362 = vld [vmem:[#allocation2 + $0x70] sm:$0xff]
          %v363 = vld [vmem:[#allocation2 + $0x78] sm:$0xff]
          %v364 = vld [vmem:[#allocation2 + $0x80] sm:$0xff]
          %v365 = vld [vmem:[#allocation2 + $0x88] sm:$0xff]
          %v366 = vld [vmem:[#allocation2 + $0x90] sm:$0xff]
          %v367 = vld [vmem:[#allocation2 + $0x98] sm:$0xff]
          %v368 = vld [vmem:[#allocation2 + $0xa0] sm:$0xff]
          %v369 = vld [vmem:[#allocation2 + $0xa8] sm:$0xff]
          %v370 = vld [vmem:[#allocation2 + $0xb0] sm:$0xff]
          %v371 = vld [vmem:[#allocation2 + $0xb8] sm:$0xff]
          %v372 = vld [vmem:[#allocation2 + $0xc0] sm:$0xff]
          %v373 = vld [vmem:[#allocation2 + $0xc8] sm:$0xff]
          %v374 = vld [vmem:[#allocation2 + $0xd0] sm:$0xff]
          %v375 = vld [vmem:[#allocation2 + $0xd8] sm:$0xff]
          %v376 = vld [vmem:[#allocation2 + $0xe0] sm:$0xff]
          %v377 = vld [vmem:[#allocation2 + $0xe8] sm:$0xff]
          %v378 = vld [vmem:[#allocation2 + $0xf0] sm:$0xff]
          %v379 = vld [vmem:[#allocation2 + $0xf8] sm:$0xff]
          %v380 = vstv %s347
          %v381 = vmul.f32 %v380, %v348
          %v382 = vmul.f32 %v380, %v349
          %v383 = vmul.f32 %v380, %v350
          %v384 = vmul.f32 %v380, %v351
          %v385 = vmul.f32 %v380, %v352
          %v386 = vmul.f32 %v380, %v353
          %v387 = vmul.f32 %v380, %v354
          %v388 = vmul.f32 %v380, %v355
          %v389 = vmul.f32 %v380, %v356
          %v390 = vmul.f32 %v380, %v357
          %v391 = vmul.f32 %v380, %v358
          %v392 = vmul.f32 %v380, %v359
          %v393 = vmul.f32 %v380, %v360
          %v394 = vmul.f32 %v380, %v361
          %v395 = vmul.f32 %v380, %v362
          %v396 = vmul.f32 %v380, %v363
          %v397 = vmul.f32 %v380, %v364
          %v398 = vmul.f32 %v380, %v365
          %v399 = vmul.f32 %v380, %v366
          %v400 = vmul.f32 %v380, %v367
          %v401 = vmul.f32 %v380, %v368
          %v402 = vmul.f32 %v380, %v369
          %v403 = vmul.f32 %v380, %v370
          %v404 = vmul.f32 %v380, %v371
          %v405 = vmul.f32 %v380, %v372
          %v406 = vmul.f32 %v380, %v373
          %v407 = vmul.f32 %v380, %v374
          %v408 = vmul.f32 %v380, %v375
          %v409 = vmul.f32 %v380, %v376
          %v410 = vmul.f32 %v380, %v377
          %v411 = vmul.f32 %v380, %v378
          %v412 = vmul.f32 %v380, %v379
          %v413 = vld [vmem:[%s227] sm:$0xff]
          %v414 = vld [vmem:[%s227 + $0x8] sm:$0xff]
          %v415 = vld [vmem:[%s227 + $0x10] sm:$0xff]
          %v416 = vld [vmem:[%s227 + $0x18] sm:$0xff]
          %v417 = vld [vmem:[%s227 + $0x20] sm:$0xff]
          %v418 = vld [vmem:[%s227 + $0x28] sm:$0xff]
          %v419 = vld [vmem:[%s227 + $0x30] sm:$0xff]
          %v420 = vld [vmem:[%s227 + $0x38] sm:$0xff]
          %v421 = vld [vmem:[%s227 + $0x40] sm:$0xff]
          %v422 = vld [vmem:[%s227 + $0x48] sm:$0xff]
          %v423 = vld [vmem:[%s227 + $0x50] sm:$0xff]
          %v424 = vld [vmem:[%s227 + $0x58] sm:$0xff]
          %v425 = vld [vmem:[%s227 + $0x60] sm:$0xff]
          %v426 = vld [vmem:[%s227 + $0x68] sm:$0xff]
          %v427 = vld [vmem:[%s227 + $0x70] sm:$0xff]
          %v428 = vld [vmem:[%s227 + $0x78] sm:$0xff]
          %v429 = vld [vmem:[%s227 + $0x80] sm:$0xff]
          %v430 = vld [vmem:[%s227 + $0x88] sm:$0xff]
          %v431 = vld [vmem:[%s227 + $0x90] sm:$0xff]
          %v432 = vld [vmem:[%s227 + $0x98] sm:$0xff]
          %v433 = vld [vmem:[%s227 + $0xa0] sm:$0xff]
          %v434 = vld [vmem:[%s227 + $0xa8] sm:$0xff]
          %v435 = vld [vmem:[%s227 + $0xb0] sm:$0xff]
          %v436 = vld [vmem:[%s227 + $0xb8] sm:$0xff]
          %v437 = vld [vmem:[%s227 + $0xc0] sm:$0xff]
          %v438 = vld [vmem:[%s227 + $0xc8] sm:$0xff]
          %v439 = vld [vmem:[%s227 + $0xd0] sm:$0xff]
          %v440 = vld [vmem:[%s227 + $0xd8] sm:$0xff]
          %v441 = vld [vmem:[%s227 + $0xe0] sm:$0xff]
          %v442 = vld [vmem:[%s227 + $0xe8] sm:$0xff]
          %v443 = vld [vmem:[%s227 + $0xf0] sm:$0xff]
          %v444 = vld [vmem:[%s227 + $0xf8] sm:$0xff]
          %v445 = vstv %s346
          %v446 = vmul.f32 %v445, %v413
          %v447 = vmul.f32 %v445, %v414
          %v448 = vmul.f32 %v445, %v415
          %v449 = vmul.f32 %v445, %v416
          %v450 = vmul.f32 %v445, %v417
          %v451 = vmul.f32 %v445, %v418
          %v452 = vmul.f32 %v445, %v419
          %v453 = vmul.f32 %v445, %v420
          %v454 = vmul.f32 %v445, %v421
          %v455 = vmul.f32 %v445, %v422
          %v456 = vmul.f32 %v445, %v423
          %v457 = vmul.f32 %v445, %v424
          %v458 = vmul.f32 %v445, %v425
          %v459 = vmul.f32 %v445, %v426
          %v460 = vmul.f32 %v445, %v427
          %v461 = vmul.f32 %v445, %v428
          %v462 = vmul.f32 %v445, %v429
          %v463 = vmul.f32 %v445, %v430
          %v464 = vmul.f32 %v445, %v431
          %v465 = vmul.f32 %v445, %v432
          %v466 = vmul.f32 %v445, %v433
          %v467 = vmul.f32 %v445, %v434
          %v468 = vmul.f32 %v445, %v435
          %v469 = vmul.f32 %v445, %v436
          %v470 = vmul.f32 %v445, %v437
          %v471 = vmul.f32 %v445, %v438
          %v472 = vmul.f32 %v445, %v439
          %v473 = vmul.f32 %v445, %v440
          %v474 = vmul.f32 %v445, %v441
          %v475 = vmul.f32 %v445, %v442
          %v476 = vmul.f32 %v445, %v443
          %v477 = vmul.f32 %v445, %v444
          %v478 = vadd.f32 %v381, %v446
          %v479 = vadd.f32 %v382, %v447
          %v480 = vadd.f32 %v383, %v448
          %v481 = vadd.f32 %v384, %v449
          %v482 = vadd.f32 %v385, %v450
          %v483 = vadd.f32 %v386, %v451
          %v484 = vadd.f32 %v387, %v452
          %v485 = vadd.f32 %v388, %v453
          %v486 = vadd.f32 %v389, %v454
          %v487 = vadd.f32 %v390, %v455
          %v488 = vadd.f32 %v391, %v456
          %v489 = vadd.f32 %v392, %v457
          %v490 = vadd.f32 %v393, %v458
          %v491 = vadd.f32 %v394, %v459
          %v492 = vadd.f32 %v395, %v460
          %v493 = vadd.f32 %v396, %v461
          %v494 = vadd.f32 %v397, %v462
          %v495 = vadd.f32 %v398, %v463
          %v496 = vadd.f32 %v399, %v464
          %v497 = vadd.f32 %v400, %v465
          %v498 = vadd.f32 %v401, %v466
          %v499 = vadd.f32 %v402, %v467
          %v500 = vadd.f32 %v403, %v468
          %v501 = vadd.f32 %v404, %v469
          %v502 = vadd.f32 %v405, %v470
          %v503 = vadd.f32 %v406, %v471
          %v504 = vadd.f32 %v407, %v472
          %v505 = vadd.f32 %v408, %v473
          %v506 = vadd.f32 %v409, %v474
          %v507 = vadd.f32 %v410, %v475
          %v508 = vadd.f32 %v411, %v476
          %v509 = vadd.f32 %v412, %v477
          %v510 = vpack.c.bf16 %v479, %v478
          %v511 = vpack.c.bf16 %v481, %v480
          %v512 = vpack.c.bf16 %v483, %v482
          %v513 = vpack.c.bf16 %v485, %v484
          %v514 = vpack.c.bf16 %v487, %v486
          %v515 = vpack.c.bf16 %v489, %v488
          %v516 = vpack.c.bf16 %v491, %v490
          %v517 = vpack.c.bf16 %v493, %v492
          %v518 = vpack.c.bf16 %v495, %v494
          %v519 = vpack.c.bf16 %v497, %v496
          %v520 = vpack.c.bf16 %v499, %v498
          %v521 = vpack.c.bf16 %v501, %v500
          %v522 = vpack.c.bf16 %v503, %v502
          %v523 = vpack.c.bf16 %v505, %v504
          %v524 = vpack.c.bf16 %v507, %v506
          %v525 = vpack.c.bf16 %v509, %v508
          %v526 = vld [vmem:[%s236] sm:$0xff]
          %v527 = vld [vmem:[%s236 + $0x8] sm:$0xff]
          %v528 = vld [vmem:[%s236 + $0x10] sm:$0xff]
          %v529 = vld [vmem:[%s236 + $0x18] sm:$0xff]
          %v530 = vld [vmem:[%s236 + $0x20] sm:$0xff]
          %v531 = vld [vmem:[%s236 + $0x28] sm:$0xff]
          %v532 = vld [vmem:[%s236 + $0x30] sm:$0xff]
          %v533 = vld [vmem:[%s236 + $0x38] sm:$0xff]
          %v534 = vld [vmem:[%s236 + $0x40] sm:$0xff]
          %v535 = vld [vmem:[%s236 + $0x48] sm:$0xff]
          %v536 = vld [vmem:[%s236 + $0x50] sm:$0xff]
          %v537 = vld [vmem:[%s236 + $0x58] sm:$0xff]
          %v538 = vld [vmem:[%s236 + $0x60] sm:$0xff]
          %v539 = vld [vmem:[%s236 + $0x68] sm:$0xff]
          %v540 = vld [vmem:[%s236 + $0x70] sm:$0xff]
          %v541 = vld [vmem:[%s236 + $0x78] sm:$0xff]
          %v542 = vpack.c.bf16 %v527, %v526
          %v543 = vpack.c.bf16 %v529, %v528
          %v544 = vpack.c.bf16 %v531, %v530
          %v545 = vpack.c.bf16 %v533, %v532
          %v546 = vpack.c.bf16 %v535, %v534
          %v547 = vpack.c.bf16 %v537, %v536
          %v548 = vpack.c.bf16 %v539, %v538
          %v549 = vpack.c.bf16 %v541, %v540
          %550 = vmatprep.subr.bf16.mxu0 0
          %551 = vmatpush1.bf16.msra.mxu0 %v542
          %552 = vmatprep.subr.bf16.mxu0 0
          %553 = vmatpush1.bf16.msra.mxu0 %v543
          %554 = vmatprep.subr.bf16.mxu0 0
          %555 = vmatpush1.bf16.msra.mxu0 %v544
          %556 = vmatprep.subr.bf16.mxu0 0
          %557 = vmatpush1.bf16.msra.mxu0 %v545
          %558 = vmatprep.subr.bf16.mxu0 0
          %559 = vmatpush1.bf16.msra.mxu0 %v546
          %560 = vmatprep.subr.bf16.mxu0 0
          %561 = vmatpush1.bf16.msra.mxu0 %v547
          %562 = vmatprep.subr.bf16.mxu0 0
          %563 = vmatpush1.bf16.msra.mxu0 %v548
          %564 = vmatprep.subr.bf16.mxu0 0
          %565 = vmatpush1.bf16.msra.mxu0 %v549
          %566 = vmatprep.subr.bf16.mxu0 0
          %567 = vmatpush1.bf16.msra.mxu0 0
          %568 = vmatprep.subr.bf16.mxu0 0
          %569 = vmatpush1.bf16.msra.mxu0 0
          %570 = vmatprep.subr.bf16.mxu0 0
          %571 = vmatpush1.bf16.msra.mxu0 0
          %572 = vmatprep.subr.bf16.mxu0 0
          %573 = vmatpush1.bf16.msra.mxu0 0
          %574 = vmatprep.subr.bf16.mxu0 0
          %575 = vmatpush1.bf16.msra.mxu0 0
          %576 = vmatprep.subr.bf16.mxu0 0
          %577 = vmatpush1.bf16.msra.mxu0 0
          %578 = vmatprep.subr.bf16.mxu0 0
          %579 = vmatpush1.bf16.msra.mxu0 0
          %580 = vmatprep.subr.bf16.mxu0 0
          %581 = vmatpush1.bf16.msra.mxu0 0
          %582 = vmatprep.mubr.bf16.mxu0 0
          %583 = vmatmul.mubr.bf16.gmra.mrb[0].mxu0 %v510
          %v584 = vpop.f32.mrb[0].mxu0
          %v585 = vadd.f32 0.0, %v584
          %v586 = vpop.f32.mrb[0].mxu0
          %v587 = vpop.f32.mrb[0].mxu0
          %v588 = vadd.f32 0.0, %v587
          %v589 = vpop.f32.mrb[0].mxu0
          %590 = vmatprep.mubr.bf16.mxu0 0
          %591 = vmatmul.mubr.bf16.gmra.mrb[0].mxu0 %v511
          %v592 = vpop.f32.mrb[0].mxu0
          %v593 = vadd.f32 0.0, %v592
          %v594 = vpop.f32.mrb[0].mxu0
          %v595 = vpop.f32.mrb[0].mxu0
          %v596 = vadd.f32 0.0, %v595
          %v597 = vpop.f32.mrb[0].mxu0
          %598 = vmatprep.mubr.bf16.mxu0 0
          %599 = vmatmul.mubr.bf16.gmra.mrb[0].mxu0 %v512
          %v600 = vpop.f32.mrb[0].mxu0
          %v601 = vadd.f32 0.0, %v600
          %v602 = vpop.f32.mrb[0].mxu0
          %v603 = vpop.f32.mrb[0].mxu0
          %v604 = vadd.f32 0.0, %v603
          %v605 = vpop.f32.mrb[0].mxu0
          %606 = vmatprep.mubr.bf16.mxu0 0
          %607 = vmatmul.mubr.bf16.gmra.mrb[0].mxu0 %v513
          %v608 = vpop.f32.mrb[0].mxu0
          %v609 = vadd.f32 0.0, %v608
          %v610 = vpop.f32.mrb[0].mxu0
          %v611 = vpop.f32.mrb[0].mxu0
          %v612 = vadd.f32 0.0, %v611
          %v613 = vpop.f32.mrb[0].mxu0
          %614 = vmatprep.mubr.bf16.mxu0 0
          %615 = vmatmul.mubr.bf16.gmra.mrb[0].mxu0 %v514
          %v616 = vpop.f32.mrb[0].mxu0
          %v617 = vadd.f32 0.0, %v616
          %v618 = vpop.f32.mrb[0].mxu0
          %v619 = vpop.f32.mrb[0].mxu0
          %v620 = vadd.f32 0.0, %v619
          %v621 = vpop.f32.mrb[0].mxu0
          %622 = vmatprep.mubr.bf16.mxu0 0
          %623 = vmatmul.mubr.bf16.gmra.mrb[0].mxu0 %v515
          %v624 = vpop.f32.mrb[0].mxu0
          %v625 = vadd.f32 0.0, %v624
          %v626 = vpop.f32.mrb[0].mxu0
          %v627 = vpop.f32.mrb[0].mxu0
          %v628 = vadd.f32 0.0, %v627
          %v629 = vpop.f32.mrb[0].mxu0
          %630 = vmatprep.mubr.bf16.mxu0 0
          %631 = vmatmul.mubr.bf16.gmra.mrb[0].mxu0 %v516
          %v632 = vpop.f32.mrb[0].mxu0
          %v633 = vadd.f32 0.0, %v632
          %v634 = vpop.f32.mrb[0].mxu0
          %v635 = vpop.f32.mrb[0].mxu0
          %v636 = vadd.f32 0.0, %v635
          %v637 = vpop.f32.mrb[0].mxu0
          %638 = vmatprep.mubr.bf16.mxu0 0
          %639 = vmatmul.mubr.bf16.gmra.mrb[0].mxu0 %v517
          %v640 = vpop.f32.mrb[0].mxu0
          %v641 = vadd.f32 0.0, %v640
          %v642 = vpop.f32.mrb[0].mxu0
          %v643 = vpop.f32.mrb[0].mxu0
          %v644 = vadd.f32 0.0, %v643
          %v645 = vpop.f32.mrb[0].mxu0
          %646 = vmatprep.mubr.bf16.mxu0 0
          %647 = vmatmul.mubr.bf16.gmra.mrb[0].mxu0 %v518
          %v648 = vpop.f32.mrb[0].mxu0
          %v649 = vadd.f32 0.0, %v648
          %v650 = vpop.f32.mrb[0].mxu0
          %v651 = vpop.f32.mrb[0].mxu0
          %v652 = vadd.f32 0.0, %v651
          %v653 = vpop.f32.mrb[0].mxu0
          %654 = vmatprep.mubr.bf16.mxu0 0
          %655 = vmatmul.mubr.bf16.gmra.mrb[0].mxu0 %v519
          %v656 = vpop.f32.mrb[0].mxu0
          %v657 = vadd.f32 0.0, %v656
          %v658 = vpop.f32.mrb[0].mxu0
          %v659 = vpop.f32.mrb[0].mxu0
          %v660 = vadd.f32 0.0, %v659
          %v661 = vpop.f32.mrb[0].mxu0
          %662 = vmatprep.mubr.bf16.mxu0 0
          %663 = vmatmul.mubr.bf16.gmra.mrb[0].mxu0 %v520
          %v664 = vpop.f32.mrb[0].mxu0
          %v665 = vadd.f32 0.0, %v664
          %v666 = vpop.f32.mrb[0].mxu0
          %v667 = vpop.f32.mrb[0].mxu0
          %v668 = vadd.f32 0.0, %v667
          %v669 = vpop.f32.mrb[0].mxu0
          %670 = vmatprep.mubr.bf16.mxu0 0
          %671 = vmatmul.mubr.bf16.gmra.mrb[0].mxu0 %v521
          %v672 = vpop.f32.mrb[0].mxu0
          %v673 = vadd.f32 0.0, %v672
          %v674 = vpop.f32.mrb[0].mxu0
          %v675 = vpop.f32.mrb[0].mxu0
          %v676 = vadd.f32 0.0, %v675
          %v677 = vpop.f32.mrb[0].mxu0
          %678 = vmatprep.mubr.bf16.mxu0 0
          %679 = vmatmul.mubr.bf16.gmra.mrb[0].mxu0 %v522
          %v680 = vpop.f32.mrb[0].mxu0
          %v681 = vadd.f32 0.0, %v680
          %v682 = vpop.f32.mrb[0].mxu0
          %v683 = vpop.f32.mrb[0].mxu0
          %v684 = vadd.f32 0.0, %v683
          %v685 = vpop.f32.mrb[0].mxu0
          %686 = vmatprep.mubr.bf16.mxu0 0
          %687 = vmatmul.mubr.bf16.gmra.mrb[0].mxu0 %v523
          %v688 = vpop.f32.mrb[0].mxu0
          %v689 = vadd.f32 0.0, %v688
          %v690 = vpop.f32.mrb[0].mxu0
          %v691 = vpop.f32.mrb[0].mxu0
          %v692 = vadd.f32 0.0, %v691
          %v693 = vpop.f32.mrb[0].mxu0
          %694 = vmatprep.mubr.bf16.mxu0 0
          %695 = vmatmul.mubr.bf16.gmra.mrb[0].mxu0 %v524
          %v696 = vpop.f32.mrb[0].mxu0
          %v697 = vadd.f32 0.0, %v696
          %v698 = vpop.f32.mrb[0].mxu0
          %v699 = vpop.f32.mrb[0].mxu0
          %v700 = vadd.f32 0.0, %v699
          %v701 = vpop.f32.mrb[0].mxu0
          %702 = vmatprep.mubr.bf16.mxu0 0
          %703 = vmatmul.mubr.bf16.gmra.mrb[0].mxu0 %v525
          %v704 = vpop.f32.mrb[0].mxu0
          %v705 = vadd.f32 0.0, %v704
          %v706 = vpop.f32.mrb[0].mxu0
          %v707 = vpop.f32.mrb[0].mxu0
          %v708 = vadd.f32 0.0, %v707
          %v709 = vpop.f32.mrb[0].mxu0
          %710 = vdwg.mxu0
          %v711 = vpack.c.bf16 %v588, %v585
          %v712 = vpack.c.bf16 %v596, %v593
          %v713 = vpack.c.bf16 %v604, %v601
          %v714 = vpack.c.bf16 %v612, %v609
          %v715 = vpack.c.bf16 %v620, %v617
          %v716 = vpack.c.bf16 %v628, %v625
          %v717 = vpack.c.bf16 %v636, %v633
          %v718 = vpack.c.bf16 %v644, %v641
          %v719 = vpack.c.bf16 %v652, %v649
          %v720 = vpack.c.bf16 %v660, %v657
          %v721 = vpack.c.bf16 %v668, %v665
          %v722 = vpack.c.bf16 %v676, %v673
          %v723 = vpack.c.bf16 %v684, %v681
          %v724 = vpack.c.bf16 %v692, %v689
          %v725 = vpack.c.bf16 %v700, %v697
          %v726 = vpack.c.bf16 %v708, %v705
          %727 = vst [vmem:[#allocation3] sm:$0xff] %v711
          %728 = vst [vmem:[#allocation3 + $0x8] sm:$0xff] %v712
          %729 = vst [vmem:[#allocation3 + $0x10] sm:$0xff] %v713
          %730 = vst [vmem:[#allocation3 + $0x18] sm:$0xff] %v714
          %731 = vst [vmem:[#allocation3 + $0x20] sm:$0xff] %v715
          %732 = vst [vmem:[#allocation3 + $0x28] sm:$0xff] %v716
          %733 = vst [vmem:[#allocation3 + $0x30] sm:$0xff] %v717
          %734 = vst [vmem:[#allocation3 + $0x38] sm:$0xff] %v718
          %735 = vst [vmem:[#allocation3 + $0x40] sm:$0xff] %v719
          %736 = vst [vmem:[#allocation3 + $0x48] sm:$0xff] %v720
          %737 = vst [vmem:[#allocation3 + $0x50] sm:$0xff] %v721
          %738 = vst [vmem:[#allocation3 + $0x58] sm:$0xff] %v722
          %739 = vst [vmem:[#allocation3 + $0x60] sm:$0xff] %v723
          %740 = vst [vmem:[#allocation3 + $0x68] sm:$0xff] %v724
          %741 = vst [vmem:[#allocation3 + $0x70] sm:$0xff] %v725
          %742 = vst [vmem:[#allocation3 + $0x78] sm:$0xff] %v726
        $region52: #{tpu_custom_call.1} parent=31 // pred_fallthru
          _
        // Predicated region
        $region53: #{tpu_custom_call.1} parent=31 // pred_check
          %p743 = pneg %p270
        $region54: #{tpu_custom_call.1} parent=31 // pred_check_branch
          %745 = sbr.rel (%p743) target = $region56
        $region55: #{tpu_custom_call.1} parent=31 // pred_region
          %746 = vst [vmem:[#allocation4] sm:$0xff] 0.0
          %747 = vst [vmem:[#allocation4 + $0x8] sm:$0xff] 0.0
          %748 = vst [vmem:[#allocation4 + $0x10] sm:$0xff] 0.0
          %749 = vst [vmem:[#allocation4 + $0x18] sm:$0xff] 0.0
          %750 = vst [vmem:[#allocation4 + $0x20] sm:$0xff] 0.0
          %751 = vst [vmem:[#allocation4 + $0x28] sm:$0xff] 0.0
          %752 = vst [vmem:[#allocation4 + $0x30] sm:$0xff] 0.0
          %753 = vst [vmem:[#allocation4 + $0x38] sm:$0xff] 0.0
          %754 = vst [vmem:[#allocation4 + $0x40] sm:$0xff] 0.0
          %755 = vst [vmem:[#allocation4 + $0x48] sm:$0xff] 0.0
          %756 = vst [vmem:[#allocation4 + $0x50] sm:$0xff] 0.0
          %757 = vst [vmem:[#allocation4 + $0x58] sm:$0xff] 0.0
          %758 = vst [vmem:[#allocation4 + $0x60] sm:$0xff] 0.0
          %759 = vst [vmem:[#allocation4 + $0x68] sm:$0xff] 0.0
          %760 = vst [vmem:[#allocation4 + $0x70] sm:$0xff] 0.0
          %761 = vst [vmem:[#allocation4 + $0x78] sm:$0xff] 0.0
          %762 = vst [vmem:[#allocation4 + $0x80] sm:$0xff] 0.0
          %763 = vst [vmem:[#allocation4 + $0x88] sm:$0xff] 0.0
          %764 = vst [vmem:[#allocation4 + $0x90] sm:$0xff] 0.0
          %765 = vst [vmem:[#allocation4 + $0x98] sm:$0xff] 0.0
          %766 = vst [vmem:[#allocation4 + $0xa0] sm:$0xff] 0.0
          %767 = vst [vmem:[#allocation4 + $0xa8] sm:$0xff] 0.0
          %768 = vst [vmem:[#allocation4 + $0xb0] sm:$0xff] 0.0
          %769 = vst [vmem:[#allocation4 + $0xb8] sm:$0xff] 0.0
          %770 = vst [vmem:[#allocation4 + $0xc0] sm:$0xff] 0.0
          %771 = vst [vmem:[#allocation4 + $0xc8] sm:$0xff] 0.0
          %772 = vst [vmem:[#allocation4 + $0xd0] sm:$0xff] 0.0
          %773 = vst [vmem:[#allocation4 + $0xd8] sm:$0xff] 0.0
          %774 = vst [vmem:[#allocation4 + $0xe0] sm:$0xff] 0.0
          %775 = vst [vmem:[#allocation4 + $0xe8] sm:$0xff] 0.0
          %776 = vst [vmem:[#allocation4 + $0xf0] sm:$0xff] 0.0
          %777 = vst [vmem:[#allocation4 + $0xf8] sm:$0xff] 0.0
        $region56: #{tpu_custom_call.1} parent=31 // pred_fallthru
          _
        %s778 = smul.u32 %s28, 256
        %v779 = vld [vmem:[#allocation4] sm:$0xff]
        %v780 = vld [vmem:[#allocation4 + $0x8] sm:$0xff]
        %v781 = vld [vmem:[#allocation4 + $0x10] sm:$0xff]
        %v782 = vld [vmem:[#allocation4 + $0x18] sm:$0xff]
        %v783 = vld [vmem:[#allocation4 + $0x20] sm:$0xff]
        %v784 = vld [vmem:[#allocation4 + $0x28] sm:$0xff]
        %v785 = vld [vmem:[#allocation4 + $0x30] sm:$0xff]
        %v786 = vld [vmem:[#allocation4 + $0x38] sm:$0xff]
        %v787 = vld [vmem:[#allocation4 + $0x40] sm:$0xff]
        %v788 = vld [vmem:[#allocation4 + $0x48] sm:$0xff]
        %v789 = vld [vmem:[#allocation4 + $0x50] sm:$0xff]
        %v790 = vld [vmem:[#allocation4 + $0x58] sm:$0xff]
        %v791 = vld [vmem:[#allocation4 + $0x60] sm:$0xff]
        %v792 = vld [vmem:[#allocation4 + $0x68] sm:$0xff]
        %v793 = vld [vmem:[#allocation4 + $0x70] sm:$0xff]
        %v794 = vld [vmem:[#allocation4 + $0x78] sm:$0xff]
        %v795 = vld [vmem:[#allocation4 + $0x80] sm:$0xff]
        %v796 = vld [vmem:[#allocation4 + $0x88] sm:$0xff]
        %v797 = vld [vmem:[#allocation4 + $0x90] sm:$0xff]
        %v798 = vld [vmem:[#allocation4 + $0x98] sm:$0xff]
        %v799 = vld [vmem:[#allocation4 + $0xa0] sm:$0xff]
        %v800 = vld [vmem:[#allocation4 + $0xa8] sm:$0xff]
        %v801 = vld [vmem:[#allocation4 + $0xb0] sm:$0xff]
        %v802 = vld [vmem:[#allocation4 + $0xb8] sm:$0xff]
        %v803 = vld [vmem:[#allocation4 + $0xc0] sm:$0xff]
        %v804 = vld [vmem:[#allocation4 + $0xc8] sm:$0xff]
        %v805 = vld [vmem:[#allocation4 + $0xd0] sm:$0xff]
        %v806 = vld [vmem:[#allocation4 + $0xd8] sm:$0xff]
        %v807 = vld [vmem:[#allocation4 + $0xe0] sm:$0xff]
        %v808 = vld [vmem:[#allocation4 + $0xe8] sm:$0xff]
        %v809 = vld [vmem:[#allocation4 + $0xf0] sm:$0xff]
        %v810 = vld [vmem:[#allocation4 + $0xf8] sm:$0xff]
        %v811 = vld [vmem:[#allocation10] sm:$0xff]
        %v812 = vld [vmem:[#allocation10 + $0x8] sm:$0xff]
        %v813 = vld [vmem:[#allocation10 + $0x10] sm:$0xff]
        %v814 = vld [vmem:[#allocation10 + $0x18] sm:$0xff]
        %v815 = vld [vmem:[#allocation10 + $0x20] sm:$0xff]
        %v816 = vld [vmem:[#allocation10 + $0x28] sm:$0xff]
        %v817 = vld [vmem:[#allocation10 + $0x30] sm:$0xff]
        %v818 = vld [vmem:[#allocation10 + $0x38] sm:$0xff]
        %v819 = vld [vmem:[#allocation10 + $0x40] sm:$0xff]
        %v820 = vld [vmem:[#allocation10 + $0x48] sm:$0xff]
        %v821 = vld [vmem:[#allocation10 + $0x50] sm:$0xff]
        %v822 = vld [vmem:[#allocation10 + $0x58] sm:$0xff]
        %v823 = vld [vmem:[#allocation10 + $0x60] sm:$0xff]
        %v824 = vld [vmem:[#allocation10 + $0x68] sm:$0xff]
        %v825 = vld [vmem:[#allocation10 + $0x70] sm:$0xff]
        %v826 = vld [vmem:[#allocation10 + $0x78] sm:$0xff]
        %v827 = vld [vmem:[#allocation10 + $0x80] sm:$0xff]
        %v828 = vld [vmem:[#allocation10 + $0x88] sm:$0xff]
        %v829 = vld [vmem:[#allocation10 + $0x90] sm:$0xff]
        %v830 = vld [vmem:[#allocation10 + $0x98] sm:$0xff]
        %v831 = vld [vmem:[#allocation10 + $0xa0] sm:$0xff]
        %v832 = vld [vmem:[#allocation10 + $0xa8] sm:$0xff]
        %v833 = vld [vmem:[#allocation10 + $0xb0] sm:$0xff]
        %v834 = vld [vmem:[#allocation10 + $0xb8] sm:$0xff]
        %v835 = vld [vmem:[#allocation10 + $0xc0] sm:$0xff]
        %v836 = vld [vmem:[#allocation10 + $0xc8] sm:$0xff]
        %v837 = vld [vmem:[#allocation10 + $0xd0] sm:$0xff]
        %v838 = vld [vmem:[#allocation10 + $0xd8] sm:$0xff]
        %v839 = vld [vmem:[#allocation10 + $0xe0] sm:$0xff]
        %v840 = vld [vmem:[#allocation10 + $0xe8] sm:$0xff]
        %v841 = vld [vmem:[#allocation10 + $0xf0] sm:$0xff]
        %v842 = vld [vmem:[#allocation10 + $0xf8] sm:$0xff]
        %s843 = sshra.s32 %s778, 4
        %s844 = sand.u32 %s778, 15
        %s845 = smul.addr %s843, 8
        %s846 = scalar_lea.vmem [#allocation3], %s845
        %v847 = vld [vmem:[%s846] sm:$0xff]
        %v848 = vld [vmem:[%s846 + $0x8] sm:$0xff]
        %v849 = vld [vmem:[%s846 + $0x10] sm:$0xff]
        %v850 = vld [vmem:[%s846 + $0x18] sm:$0xff]
        %v851 = vld [vmem:[%s846 + $0x20] sm:$0xff]
        %v852 = vld [vmem:[%s846 + $0x28] sm:$0xff]
        %v853 = vld [vmem:[%s846 + $0x30] sm:$0xff]
        %v854 = vld [vmem:[%s846 + $0x38] sm:$0xff]
        %v855 = vld [vmem:[%s846 + $0x40] sm:$0xff]
        %v856 = vld [vmem:[%s846 + $0x48] sm:$0xff]
        %v857 = vld [vmem:[%s846 + $0x50] sm:$0xff]
        %v858 = vld [vmem:[%s846 + $0x58] sm:$0xff]
        %v859 = vld [vmem:[%s846 + $0x60] sm:$0xff]
        %v860 = vld [vmem:[%s846 + $0x68] sm:$0xff]
        %v861 = vld [vmem:[%s846 + $0x70] sm:$0xff]
        %v862 = vld [vmem:[%s846 + $0x78] sm:$0xff]
        %v895 = vunpack.c.l.b16 %v811
        %v896 = vunpack.c.h.b16 %v811
        %v897 = vunpack.c.l.b16 %v812
        %v898 = vunpack.c.h.b16 %v812
        %v899 = vunpack.c.l.b16 %v813
        %v900 = vunpack.c.h.b16 %v813
        %v901 = vunpack.c.l.b16 %v814
        %v902 = vunpack.c.h.b16 %v814
        %v903 = vunpack.c.l.b16 %v815
        %v904 = vunpack.c.h.b16 %v815
        %v905 = vunpack.c.l.b16 %v816
        %v906 = vunpack.c.h.b16 %v816
        %v907 = vunpack.c.l.b16 %v817
        %v908 = vunpack.c.h.b16 %v817
        %v909 = vunpack.c.l.b16 %v818
        %v910 = vunpack.c.h.b16 %v818
        %v911 = vunpack.c.l.b16 %v819
        %v912 = vunpack.c.h.b16 %v819
        %v913 = vunpack.c.l.b16 %v820
        %v914 = vunpack.c.h.b16 %v820
        %v915 = vunpack.c.l.b16 %v821
        %v916 = vunpack.c.h.b16 %v821
        %v917 = vunpack.c.l.b16 %v822
        %v918 = vunpack.c.h.b16 %v822
        %v919 = vunpack.c.l.b16 %v823
        %v920 = vunpack.c.h.b16 %v823
        %v921 = vunpack.c.l.b16 %v824
        %v922 = vunpack.c.h.b16 %v824
        %v923 = vunpack.c.l.b16 %v825
        %v924 = vunpack.c.h.b16 %v825
        %v925 = vunpack.c.l.b16 %v826
        %v926 = vunpack.c.h.b16 %v826
        %v927 = vunpack.c.l.b16 %v827
        %v928 = vunpack.c.h.b16 %v827
        %v929 = vunpack.c.l.b16 %v828
        %v930 = vunpack.c.h.b16 %v828
        %v931 = vunpack.c.l.b16 %v829
        %v932 = vunpack.c.h.b16 %v829
        %v933 = vunpack.c.l.b16 %v830
        %v934 = vunpack.c.h.b16 %v830
        %v935 = vunpack.c.l.b16 %v831
        %v936 = vunpack.c.h.b16 %v831
        %v937 = vunpack.c.l.b16 %v832
        %v938 = vunpack.c.h.b16 %v832
        %v939 = vunpack.c.l.b16 %v833
        %v940 = vunpack.c.h.b16 %v833
        %v941 = vunpack.c.l.b16 %v834
        %v942 = vunpack.c.h.b16 %v834
        %v943 = vunpack.c.l.b16 %v835
        %v944 = vunpack.c.h.b16 %v835
        %v945 = vunpack.c.l.b16 %v836
        %v946 = vunpack.c.h.b16 %v836
        %v947 = vunpack.c.l.b16 %v837
        %v948 = vunpack.c.h.b16 %v837
        %v949 = vunpack.c.l.b16 %v838
        %v950 = vunpack.c.h.b16 %v838
        %v951 = vunpack.c.l.b16 %v839
        %v952 = vunpack.c.h.b16 %v839
        %v953 = vunpack.c.l.b16 %v840
        %v954 = vunpack.c.h.b16 %v840
        %v955 = vunpack.c.l.b16 %v841
        %v956 = vunpack.c.h.b16 %v841
        %v957 = vunpack.c.l.b16 %v842
        %v958 = vunpack.c.h.b16 %v842
        %v959 = vpack.c.b16 %v897, %v895
        %v960 = vpack.c.b16 %v898, %v896
        %v961 = vpack.c.b16 %v901, %v899
        %v962 = vpack.c.b16 %v902, %v900
        %v963 = vpack.c.b16 %v905, %v903
        %v964 = vpack.c.b16 %v906, %v904
        %v965 = vpack.c.b16 %v909, %v907
        %v966 = vpack.c.b16 %v910, %v908
        %v967 = vpack.c.b16 %v913, %v911
        %v968 = vpack.c.b16 %v914, %v912
        %v969 = vpack.c.b16 %v917, %v915
        %v970 = vpack.c.b16 %v918, %v916
        %v971 = vpack.c.b16 %v921, %v919
        %v972 = vpack.c.b16 %v922, %v920
        %v973 = vpack.c.b16 %v925, %v923
        %v974 = vpack.c.b16 %v926, %v924
        %v975 = vpack.c.b16 %v929, %v927
        %v976 = vpack.c.b16 %v930, %v928
        %v977 = vpack.c.b16 %v933, %v931
        %v978 = vpack.c.b16 %v934, %v932
        %v979 = vpack.c.b16 %v937, %v935
        %v980 = vpack.c.b16 %v938, %v936
        %v981 = vpack.c.b16 %v941, %v939
        %v982 = vpack.c.b16 %v942, %v940
        %v983 = vpack.c.b16 %v945, %v943
        %v984 = vpack.c.b16 %v946, %v944
        %v985 = vpack.c.b16 %v949, %v947
        %v986 = vpack.c.b16 %v950, %v948
        %v987 = vpack.c.b16 %v953, %v951
        %v988 = vpack.c.b16 %v954, %v952
        %v989 = vpack.c.b16 %v957, %v955
        %v990 = vpack.c.b16 %v958, %v956
        %1023 = vmatprep.subr.bf16.mxu0 0
        %1024 = vmatpush1.bf16.msra.mxu0 %v847
        %1025 = vmatprep.subr.bf16.mxu0 0
        %1026 = vmatpush1.bf16.msra.mxu0 %v848
        %1027 = vmatprep.subr.bf16.mxu0 0
        %1028 = vmatpush1.bf16.msra.mxu0 %v849
        %1029 = vmatprep.subr.bf16.mxu0 0
        %1030 = vmatpush1.bf16.msra.mxu0 %v850
        %1031 = vmatprep.subr.bf16.mxu0 0
        %1032 = vmatpush1.bf16.msra.mxu0 %v851
        %1033 = vmatprep.subr.bf16.mxu0 0
        %1034 = vmatpush1.bf16.msra.mxu0 %v852
        %1035 = vmatprep.subr.bf16.mxu0 0
        %1036 = vmatpush1.bf16.msra.mxu0 %v853
        %1037 = vmatprep.subr.bf16.mxu0 0
        %1038 = vmatpush1.bf16.msra.mxu0 %v854
        %1039 = vmatprep.subr.bf16.mxu0 0
        %1040 = vmatpush1.bf16.msra.mxu0 %v855
        %1041 = vmatprep.subr.bf16.mxu0 0
        %1042 = vmatpush1.bf16.msra.mxu0 %v856
        %1043 = vmatprep.subr.bf16.mxu0 0
        %1044 = vmatpush1.bf16.msra.mxu0 %v857
        %1045 = vmatprep.subr.bf16.mxu0 0
        %1046 = vmatpush1.bf16.msra.mxu0 %v858
        %1047 = vmatprep.subr.bf16.mxu0 0
        %1048 = vmatpush1.bf16.msra.mxu0 %v859
        %1049 = vmatprep.subr.bf16.mxu0 0
        %1050 = vmatpush1.bf16.msra.mxu0 %v860
        %1051 = vmatprep.subr.bf16.mxu0 0
        %1052 = vmatpush1.bf16.msra.mxu0 %v861
        %1053 = vmatprep.subr.bf16.mxu0 0
        %1054 = vmatpush1.bf16.msra.mxu0 %v862
        %1055 = vmatprep.mubr.bf16.mxu0 %v960
        %1056 = vmatmul.mubr.bf16.gmra.mrb[0].mxu0 %v959
        %v1057 = vpop.f32.mrb[0].mxu0
        %v1058 = vadd.f32 0.0, %v1057
        %v1059 = vpop.f32.mrb[0].mxu0
        %v1060 = vpop.f32.mrb[0].mxu0
        %v1061 = vadd.f32 0.0, %v1060
        %v1062 = vpop.f32.mrb[0].mxu0
        %1063 = vmatprep.mubr.bf16.mxu0 %v962
        %1064 = vmatmul.mubr.bf16.gmra.mrb[0].mxu0 %v961
        %v1065 = vpop.f32.mrb[0].mxu0
        %v1066 = vadd.f32 0.0, %v1065
        %v1067 = vpop.f32.mrb[0].mxu0
        %v1068 = vpop.f32.mrb[0].mxu0
        %v1069 = vadd.f32 0.0, %v1068
        %v1070 = vpop.f32.mrb[0].mxu0
        %1071 = vmatprep.mubr.bf16.mxu0 %v964
        %1072 = vmatmul.mubr.bf16.gmra.mrb[0].mxu0 %v963
        %v1073 = vpop.f32.mrb[0].mxu0
        %v1074 = vadd.f32 0.0, %v1073
        %v1075 = vpop.f32.mrb[0].mxu0
        %v1076 = vpop.f32.mrb[0].mxu0
        %v1077 = vadd.f32 0.0, %v1076
        %v1078 = vpop.f32.mrb[0].mxu0
        %1079 = vmatprep.mubr.bf16.mxu0 %v966
        %1080 = vmatmul.mubr.bf16.gmra.mrb[0].mxu0 %v965
        %v1081 = vpop.f32.mrb[0].mxu0
        %v1082 = vadd.f32 0.0, %v1081
        %v1083 = vpop.f32.mrb[0].mxu0
        %v1084 = vpop.f32.mrb[0].mxu0
        %v1085 = vadd.f32 0.0, %v1084
        %v1086 = vpop.f32.mrb[0].mxu0
        %1087 = vmatprep.mubr.bf16.mxu0 %v968
        %1088 = vmatmul.mubr.bf16.gmra.mrb[0].mxu0 %v967
        %v1089 = vpop.f32.mrb[0].mxu0
        %v1090 = vadd.f32 0.0, %v1089
        %v1091 = vpop.f32.mrb[0].mxu0
        %v1092 = vpop.f32.mrb[0].mxu0
        %v1093 = vadd.f32 0.0, %v1092
        %v1094 = vpop.f32.mrb[0].mxu0
        %1095 = vmatprep.mubr.bf16.mxu0 %v970
        %1096 = vmatmul.mubr.bf16.gmra.mrb[0].mxu0 %v969
        %v1097 = vpop.f32.mrb[0].mxu0
        %v1098 = vadd.f32 0.0, %v1097
        %v1099 = vpop.f32.mrb[0].mxu0
        %v1100 = vpop.f32.mrb[0].mxu0
        %v1101 = vadd.f32 0.0, %v1100
        %v1102 = vpop.f32.mrb[0].mxu0
        %1103 = vmatprep.mubr.bf16.mxu0 %v972
        %1104 = vmatmul.mubr.bf16.gmra.mrb[0].mxu0 %v971
        %v1105 = vpop.f32.mrb[0].mxu0
        %v1106 = vadd.f32 0.0, %v1105
        %v1107 = vpop.f32.mrb[0].mxu0
        %v1108 = vpop.f32.mrb[0].mxu0
        %v1109 = vadd.f32 0.0, %v1108
        %v1110 = vpop.f32.mrb[0].mxu0
        %1111 = vmatprep.mubr.bf16.mxu0 %v974
        %1112 = vmatmul.mubr.bf16.gmra.mrb[0].mxu0 %v973
        %v1113 = vpop.f32.mrb[0].mxu0
        %v1114 = vadd.f32 0.0, %v1113
        %v1115 = vpop.f32.mrb[0].mxu0
        %v1116 = vpop.f32.mrb[0].mxu0
        %v1117 = vadd.f32 0.0, %v1116
        %v1118 = vpop.f32.mrb[0].mxu0
        %1119 = vmatprep.mubr.bf16.mxu0 %v976
        %1120 = vmatmul.mubr.bf16.gmra.mrb[0].mxu0 %v975
        %v1121 = vpop.f32.mrb[0].mxu0
        %v1122 = vadd.f32 0.0, %v1121
        %v1123 = vpop.f32.mrb[0].mxu0
        %v1124 = vpop.f32.mrb[0].mxu0
        %v1125 = vadd.f32 0.0, %v1124
        %v1126 = vpop.f32.mrb[0].mxu0
        %1127 = vmatprep.mubr.bf16.mxu0 %v978
        %1128 = vmatmul.mubr.bf16.gmra.mrb[0].mxu0 %v977
        %v1129 = vpop.f32.mrb[0].mxu0
        %v1130 = vadd.f32 0.0, %v1129
        %v1131 = vpop.f32.mrb[0].mxu0
        %v1132 = vpop.f32.mrb[0].mxu0
        %v1133 = vadd.f32 0.0, %v1132
        %v1134 = vpop.f32.mrb[0].mxu0
        %1135 = vmatprep.mubr.bf16.mxu0 %v980
        %1136 = vmatmul.mubr.bf16.gmra.mrb[0].mxu0 %v979
        %v1137 = vpop.f32.mrb[0].mxu0
        %v1138 = vadd.f32 0.0, %v1137
        %v1139 = vpop.f32.mrb[0].mxu0
        %v1140 = vpop.f32.mrb[0].mxu0
        %v1141 = vadd.f32 0.0, %v1140
        %v1142 = vpop.f32.mrb[0].mxu0
        %1143 = vmatprep.mubr.bf16.mxu0 %v982
        %1144 = vmatmul.mubr.bf16.gmra.mrb[0].mxu0 %v981
        %v1145 = vpop.f32.mrb[0].mxu0
        %v1146 = vadd.f32 0.0, %v1145
        %v1147 = vpop.f32.mrb[0].mxu0
        %v1148 = vpop.f32.mrb[0].mxu0
        %v1149 = vadd.f32 0.0, %v1148
        %v1150 = vpop.f32.mrb[0].mxu0
        %1151 = vmatprep.mubr.bf16.mxu0 %v984
        %1152 = vmatmul.mubr.bf16.gmra.mrb[0].mxu0 %v983
        %v1153 = vpop.f32.mrb[0].mxu0
        %v1154 = vadd.f32 0.0, %v1153
        %v1155 = vpop.f32.mrb[0].mxu0
        %v1156 = vpop.f32.mrb[0].mxu0
        %v1157 = vadd.f32 0.0, %v1156
        %v1158 = vpop.f32.mrb[0].mxu0
        %1159 = vmatprep.mubr.bf16.mxu0 %v986
        %1160 = vmatmul.mubr.bf16.gmra.mrb[0].mxu0 %v985
        %v1161 = vpop.f32.mrb[0].mxu0
        %v1162 = vadd.f32 0.0, %v1161
        %v1163 = vpop.f32.mrb[0].mxu0
        %v1164 = vpop.f32.mrb[0].mxu0
        %v1165 = vadd.f32 0.0, %v1164
        %v1166 = vpop.f32.mrb[0].mxu0
        %1167 = vmatprep.mubr.bf16.mxu0 %v988
        %1168 = vmatmul.mubr.bf16.gmra.mrb[0].mxu0 %v987
        %v1169 = vpop.f32.mrb[0].mxu0
        %v1170 = vadd.f32 0.0, %v1169
        %v1171 = vpop.f32.mrb[0].mxu0
        %v1172 = vpop.f32.mrb[0].mxu0
        %v1173 = vadd.f32 0.0, %v1172
        %v1174 = vpop.f32.mrb[0].mxu0
        %1175 = vmatprep.mubr.bf16.mxu0 %v990
        %1176 = vmatmul.mubr.bf16.gmra.mrb[0].mxu0 %v989
        %v1177 = vpop.f32.mrb[0].mxu0
        %v1178 = vadd.f32 0.0, %v1177
        %v1179 = vpop.f32.mrb[0].mxu0
        %v1180 = vpop.f32.mrb[0].mxu0
        %v1181 = vadd.f32 0.0, %v1180
        %v1182 = vpop.f32.mrb[0].mxu0
        %1183 = vdwg.mxu0
        %v1184 = vadd.f32 %v779, %v1058
        %v1185 = vadd.f32 %v780, %v1061
        %v1186 = vadd.f32 %v781, %v1066
        %v1187 = vadd.f32 %v782, %v1069
        %v1188 = vadd.f32 %v783, %v1074
        %v1189 = vadd.f32 %v784, %v1077
        %v1190 = vadd.f32 %v785, %v1082
        %v1191 = vadd.f32 %v786, %v1085
        %v1192 = vadd.f32 %v787, %v1090
        %v1193 = vadd.f32 %v788, %v1093
        %v1194 = vadd.f32 %v789, %v1098
        %v1195 = vadd.f32 %v790, %v1101
        %v1196 = vadd.f32 %v791, %v1106
        %v1197 = vadd.f32 %v792, %v1109
        %v1198 = vadd.f32 %v793, %v1114
        %v1199 = vadd.f32 %v794, %v1117
        %v1200 = vadd.f32 %v795, %v1122
        %v1201 = vadd.f32 %v796, %v1125
        %v1202 = vadd.f32 %v797, %v1130
        %v1203 = vadd.f32 %v798, %v1133
        %v1204 = vadd.f32 %v799, %v1138
        %v1205 = vadd.f32 %v800, %v1141
        %v1206 = vadd.f32 %v801, %v1146
        %v1207 = vadd.f32 %v802, %v1149
        %v1208 = vadd.f32 %v803, %v1154
        %v1209 = vadd.f32 %v804, %v1157
        %v1210 = vadd.f32 %v805, %v1162
        %v1211 = vadd.f32 %v806, %v1165
        %v1212 = vadd.f32 %v807, %v1170
        %v1213 = vadd.f32 %v808, %v1173
        %v1214 = vadd.f32 %v809, %v1178
        %v1215 = vadd.f32 %v810, %v1181
        %1216 = vst [vmem:[#allocation4] sm:$0xff] %v1184
        %1217 = vst [vmem:[#allocation4 + $0x8] sm:$0xff] %v1185
        %1218 = vst [vmem:[#allocation4 + $0x10] sm:$0xff] %v1186
        %1219 = vst [vmem:[#allocation4 + $0x18] sm:$0xff] %v1187
        %1220 = vst [vmem:[#allocation4 + $0x20] sm:$0xff] %v1188
        %1221 = vst [vmem:[#allocation4 + $0x28] sm:$0xff] %v1189
        %1222 = vst [vmem:[#allocation4 + $0x30] sm:$0xff] %v1190
        %1223 = vst [vmem:[#allocation4 + $0x38] sm:$0xff] %v1191
        %1224 = vst [vmem:[#allocation4 + $0x40] sm:$0xff] %v1192
        %1225 = vst [vmem:[#allocation4 + $0x48] sm:$0xff] %v1193
        %1226 = vst [vmem:[#allocation4 + $0x50] sm:$0xff] %v1194
        %1227 = vst [vmem:[#allocation4 + $0x58] sm:$0xff] %v1195
        %1228 = vst [vmem:[#allocation4 + $0x60] sm:$0xff] %v1196
        %1229 = vst [vmem:[#allocation4 + $0x68] sm:$0xff] %v1197
        %1230 = vst [vmem:[#allocation4 + $0x70] sm:$0xff] %v1198
        %1231 = vst [vmem:[#allocation4 + $0x78] sm:$0xff] %v1199
        %1232 = vst [vmem:[#allocation4 + $0x80] sm:$0xff] %v1200
        %1233 = vst [vmem:[#allocation4 + $0x88] sm:$0xff] %v1201
        %1234 = vst [vmem:[#allocation4 + $0x90] sm:$0xff] %v1202
        %1235 = vst [vmem:[#allocation4 + $0x98] sm:$0xff] %v1203
        %1236 = vst [vmem:[#allocation4 + $0xa0] sm:$0xff] %v1204
        %1237 = vst [vmem:[#allocation4 + $0xa8] sm:$0xff] %v1205
        %1238 = vst [vmem:[#allocation4 + $0xb0] sm:$0xff] %v1206
        %1239 = vst [vmem:[#allocation4 + $0xb8] sm:$0xff] %v1207
        %1240 = vst [vmem:[#allocation4 + $0xc0] sm:$0xff] %v1208
        %1241 = vst [vmem:[#allocation4 + $0xc8] sm:$0xff] %v1209
        %1242 = vst [vmem:[#allocation4 + $0xd0] sm:$0xff] %v1210
        %1243 = vst [vmem:[#allocation4 + $0xd8] sm:$0xff] %v1211
        %1244 = vst [vmem:[#allocation4 + $0xe0] sm:$0xff] %v1212
        %1245 = vst [vmem:[#allocation4 + $0xe8] sm:$0xff] %v1213
        %1246 = vst [vmem:[#allocation4 + $0xf0] sm:$0xff] %v1214
        %1247 = vst [vmem:[#allocation4 + $0xf8] sm:$0xff] %v1215
        %s1248 = smul.u32 %s27, 256
        %p1249 = scmp.lt.s32.totalorder %s26, 4
        %p1250 = pnand %p270, %p1249
        %p1251 = pneg %p1250
        // Predicated region
        $region57: #{tpu_custom_call.1} parent=31 // pred_check
          _
        $region58: #{tpu_custom_call.1} parent=31 // pred_check_branch
          %1253 = sbr.rel (%p1250) target = $region60
        $region59: #{tpu_custom_call.1} parent=31 // pred_region
          %v1254 = vld [vmem:[#allocation4] sm:$0xff]
          %v1255 = vld [vmem:[#allocation4 + $0x8] sm:$0xff]
          %v1256 = vld [vmem:[#allocation4 + $0x10] sm:$0xff]
          %v1257 = vld [vmem:[#allocation4 + $0x18] sm:$0xff]
          %v1258 = vld [vmem:[#allocation4 + $0x20] sm:$0xff]
          %v1259 = vld [vmem:[#allocation4 + $0x28] sm:$0xff]
          %v1260 = vld [vmem:[#allocation4 + $0x30] sm:$0xff]
          %v1261 = vld [vmem:[#allocation4 + $0x38] sm:$0xff]
          %v1262 = vld [vmem:[#allocation4 + $0x40] sm:$0xff]
          %v1263 = vld [vmem:[#allocation4 + $0x48] sm:$0xff]
          %v1264 = vld [vmem:[#allocation4 + $0x50] sm:$0xff]
          %v1265 = vld [vmem:[#allocation4 + $0x58] sm:$0xff]
          %v1266 = vld [vmem:[#allocation4 + $0x60] sm:$0xff]
          %v1267 = vld [vmem:[#allocation4 + $0x68] sm:$0xff]
          %v1268 = vld [vmem:[#allocation4 + $0x70] sm:$0xff]
          %v1269 = vld [vmem:[#allocation4 + $0x78] sm:$0xff]
          %v1270 = vld [vmem:[#allocation4 + $0x80] sm:$0xff]
          %v1271 = vld [vmem:[#allocation4 + $0x88] sm:$0xff]
          %v1272 = vld [vmem:[#allocation4 + $0x90] sm:$0xff]
          %v1273 = vld [vmem:[#allocation4 + $0x98] sm:$0xff]
          %v1274 = vld [vmem:[#allocation4 + $0xa0] sm:$0xff]
          %v1275 = vld [vmem:[#allocation4 + $0xa8] sm:$0xff]
          %v1276 = vld [vmem:[#allocation4 + $0xb0] sm:$0xff]
          %v1277 = vld [vmem:[#allocation4 + $0xb8] sm:$0xff]
          %v1278 = vld [vmem:[#allocation4 + $0xc0] sm:$0xff]
          %v1279 = vld [vmem:[#allocation4 + $0xc8] sm:$0xff]
          %v1280 = vld [vmem:[#allocation4 + $0xd0] sm:$0xff]
          %v1281 = vld [vmem:[#allocation4 + $0xd8] sm:$0xff]
          %v1282 = vld [vmem:[#allocation4 + $0xe0] sm:$0xff]
          %v1283 = vld [vmem:[#allocation4 + $0xe8] sm:$0xff]
          %v1284 = vld [vmem:[#allocation4 + $0xf0] sm:$0xff]
          %v1285 = vld [vmem:[#allocation4 + $0xf8] sm:$0xff]
          %v1286 = vmax.f32 %v1254, 0.0
          %v1287 = vmax.f32 %v1255, 0.0
          %v1288 = vmax.f32 %v1256, 0.0
          %v1289 = vmax.f32 %v1257, 0.0
          %v1290 = vmax.f32 %v1258, 0.0
          %v1291 = vmax.f32 %v1259, 0.0
          %v1292 = vmax.f32 %v1260, 0.0
          %v1293 = vmax.f32 %v1261, 0.0
          %v1294 = vmax.f32 %v1262, 0.0
          %v1295 = vmax.f32 %v1263, 0.0
          %v1296 = vmax.f32 %v1264, 0.0
          %v1297 = vmax.f32 %v1265, 0.0
          %v1298 = vmax.f32 %v1266, 0.0
          %v1299 = vmax.f32 %v1267, 0.0
          %v1300 = vmax.f32 %v1268, 0.0
          %v1301 = vmax.f32 %v1269, 0.0
          %v1302 = vmax.f32 %v1270, 0.0
          %v1303 = vmax.f32 %v1271, 0.0
          %v1304 = vmax.f32 %v1272, 0.0
          %v1305 = vmax.f32 %v1273, 0.0
          %v1306 = vmax.f32 %v1274, 0.0
          %v1307 = vmax.f32 %v1275, 0.0
          %v1308 = vmax.f32 %v1276, 0.0
          %v1309 = vmax.f32 %v1277, 0.0
          %v1310 = vmax.f32 %v1278, 0.0
          %v1311 = vmax.f32 %v1279, 0.0
          %v1312 = vmax.f32 %v1280, 0.0
          %v1313 = vmax.f32 %v1281, 0.0
          %v1314 = vmax.f32 %v1282, 0.0
          %v1315 = vmax.f32 %v1283, 0.0
          %v1316 = vmax.f32 %v1284, 0.0
          %v1317 = vmax.f32 %v1285, 0.0
          %s1318 = scalar_lea.vmem [#allocation2], %s1248
          %1319 = vst [vmem:[%s1318] sm:$0xff] %v1286
          %1320 = vst [vmem:[%s1318 + $0x8] sm:$0xff] %v1287
          %1321 = vst [vmem:[%s1318 + $0x10] sm:$0xff] %v1288
          %1322 = vst [vmem:[%s1318 + $0x18] sm:$0xff] %v1289
          %1323 = vst [vmem:[%s1318 + $0x20] sm:$0xff] %v1290
          %1324 = vst [vmem:[%s1318 + $0x28] sm:$0xff] %v1291
          %1325 = vst [vmem:[%s1318 + $0x30] sm:$0xff] %v1292
          %1326 = vst [vmem:[%s1318 + $0x38] sm:$0xff] %v1293
          %1327 = vst [vmem:[%s1318 + $0x40] sm:$0xff] %v1294
          %1328 = vst [vmem:[%s1318 + $0x48] sm:$0xff] %v1295
          %1329 = vst [vmem:[%s1318 + $0x50] sm:$0xff] %v1296
          %1330 = vst [vmem:[%s1318 + $0x58] sm:$0xff] %v1297
          %1331 = vst [vmem:[%s1318 + $0x60] sm:$0xff] %v1298
          %1332 = vst [vmem:[%s1318 + $0x68] sm:$0xff] %v1299
          %1333 = vst [vmem:[%s1318 + $0x70] sm:$0xff] %v1300
          %1334 = vst [vmem:[%s1318 + $0x78] sm:$0xff] %v1301
          %1335 = vst [vmem:[%s1318 + $0x80] sm:$0xff] %v1302
          %1336 = vst [vmem:[%s1318 + $0x88] sm:$0xff] %v1303
          %1337 = vst [vmem:[%s1318 + $0x90] sm:$0xff] %v1304
          %1338 = vst [vmem:[%s1318 + $0x98] sm:$0xff] %v1305
          %1339 = vst [vmem:[%s1318 + $0xa0] sm:$0xff] %v1306
          %1340 = vst [vmem:[%s1318 + $0xa8] sm:$0xff] %v1307
          %1341 = vst [vmem:[%s1318 + $0xb0] sm:$0xff] %v1308
          %1342 = vst [vmem:[%s1318 + $0xb8] sm:$0xff] %v1309
          %1343 = vst [vmem:[%s1318 + $0xc0] sm:$0xff] %v1310
          %1344 = vst [vmem:[%s1318 + $0xc8] sm:$0xff] %v1311
          %1345 = vst [vmem:[%s1318 + $0xd0] sm:$0xff] %v1312
          %1346 = vst [vmem:[%s1318 + $0xd8] sm:$0xff] %v1313
          %1347 = vst [vmem:[%s1318 + $0xe0] sm:$0xff] %v1314
          %1348 = vst [vmem:[%s1318 + $0xe8] sm:$0xff] %v1315
          %1349 = vst [vmem:[%s1318 + $0xf0] sm:$0xff] %v1316
          %1350 = vst [vmem:[%s1318 + $0xf8] sm:$0xff] %v1317
        $region60: #{tpu_custom_call.1} parent=31 // pred_fallthru
          _
        %p1351 = scmp.eq.s32.totalorder %s26, 4
        %p1352 = pnand %p270, %p1351
        %p1353 = pneg %p1352
        // Predicated region
        $region61: #{tpu_custom_call.1} parent=31 // pred_check
          _
        $region62: #{tpu_custom_call.1} parent=31 // pred_check_branch
          %1355 = sbr.rel (%p1352) target = $region64
        $region63: #{tpu_custom_call.1} parent=31 // pred_region
          %v1356 = vld [vmem:[#allocation4] sm:$0xff]
          %v1357 = vld [vmem:[#allocation4 + $0x8] sm:$0xff]
          %v1358 = vld [vmem:[#allocation4 + $0x10] sm:$0xff]
          %v1359 = vld [vmem:[#allocation4 + $0x18] sm:$0xff]
          %v1360 = vld [vmem:[#allocation4 + $0x20] sm:$0xff]
          %v1361 = vld [vmem:[#allocation4 + $0x28] sm:$0xff]
          %v1362 = vld [vmem:[#allocation4 + $0x30] sm:$0xff]
          %v1363 = vld [vmem:[#allocation4 + $0x38] sm:$0xff]
          %v1364 = vld [vmem:[#allocation4 + $0x40] sm:$0xff]
          %v1365 = vld [vmem:[#allocation4 + $0x48] sm:$0xff]
          %v1366 = vld [vmem:[#allocation4 + $0x50] sm:$0xff]
          %v1367 = vld [vmem:[#allocation4 + $0x58] sm:$0xff]
          %v1368 = vld [vmem:[#allocation4 + $0x60] sm:$0xff]
          %v1369 = vld [vmem:[#allocation4 + $0x68] sm:$0xff]
          %v1370 = vld [vmem:[#allocation4 + $0x70] sm:$0xff]
          %v1371 = vld [vmem:[#allocation4 + $0x78] sm:$0xff]
          %v1372 = vld [vmem:[#allocation4 + $0x80] sm:$0xff]
          %v1373 = vld [vmem:[#allocation4 + $0x88] sm:$0xff]
          %v1374 = vld [vmem:[#allocation4 + $0x90] sm:$0xff]
          %v1375 = vld [vmem:[#allocation4 + $0x98] sm:$0xff]
          %v1376 = vld [vmem:[#allocation4 + $0xa0] sm:$0xff]
          %v1377 = vld [vmem:[#allocation4 + $0xa8] sm:$0xff]
          %v1378 = vld [vmem:[#allocation4 + $0xb0] sm:$0xff]
          %v1379 = vld [vmem:[#allocation4 + $0xb8] sm:$0xff]
          %v1380 = vld [vmem:[#allocation4 + $0xc0] sm:$0xff]
          %v1381 = vld [vmem:[#allocation4 + $0xc8] sm:$0xff]
          %v1382 = vld [vmem:[#allocation4 + $0xd0] sm:$0xff]
          %v1383 = vld [vmem:[#allocation4 + $0xd8] sm:$0xff]
          %v1384 = vld [vmem:[#allocation4 + $0xe0] sm:$0xff]
          %v1385 = vld [vmem:[#allocation4 + $0xe8] sm:$0xff]
          %v1386 = vld [vmem:[#allocation4 + $0xf0] sm:$0xff]
          %v1387 = vld [vmem:[#allocation4 + $0xf8] sm:$0xff]
          %v1388 = vlaneseq
          %v1389 = vand.u32 %v1388, 127
          %vm1390 = vcmp.lt.s32.totalorder %v1389, 8
          %v1391 = vsel %vm1390, %v1356, -1e+30
          %v1392 = vsel %vm1390, %v1357, -1e+30
          %v1393 = vsel %vm1390, %v1358, -1e+30
          %v1394 = vsel %vm1390, %v1359, -1e+30
          %v1395 = vsel %vm1390, %v1360, -1e+30
          %v1396 = vsel %vm1390, %v1361, -1e+30
          %v1397 = vsel %vm1390, %v1362, -1e+30
          %v1398 = vsel %vm1390, %v1363, -1e+30
          %v1399 = vsel %vm1390, %v1364, -1e+30
          %v1400 = vsel %vm1390, %v1365, -1e+30
          %v1401 = vsel %vm1390, %v1366, -1e+30
          %v1402 = vsel %vm1390, %v1367, -1e+30
          %v1403 = vsel %vm1390, %v1368, -1e+30
          %v1404 = vsel %vm1390, %v1369, -1e+30
          %v1405 = vsel %vm1390, %v1370, -1e+30
          %v1406 = vsel %vm1390, %v1371, -1e+30
          %v1407 = vsel %vm1390, %v1372, -1e+30
          %v1408 = vsel %vm1390, %v1373, -1e+30
          %v1409 = vsel %vm1390, %v1374, -1e+30
          %v1410 = vsel %vm1390, %v1375, -1e+30
          %v1411 = vsel %vm1390, %v1376, -1e+30
          %v1412 = vsel %vm1390, %v1377, -1e+30
          %v1413 = vsel %vm1390, %v1378, -1e+30
          %v1414 = vsel %vm1390, %v1379, -1e+30
          %v1415 = vsel %vm1390, %v1380, -1e+30
          %v1416 = vsel %vm1390, %v1381, -1e+30
          %v1417 = vsel %vm1390, %v1382, -1e+30
          %v1418 = vsel %vm1390, %v1383, -1e+30
          %v1419 = vsel %vm1390, %v1384, -1e+30
          %v1420 = vsel %vm1390, %v1385, -1e+30
          %v1421 = vsel %vm1390, %v1386, -1e+30
          %v1422 = vsel %vm1390, %v1387, -1e+30
          %1423 = vmax.xlane.f32.xlu0 %v1391
          %v1424 = vpop.xlane.xlu0 %1423
          %1425 = vmax.xlane.f32.xlu0 %v1392
          %v1426 = vpop.xlane.xlu0 %1425
          %1427 = vmax.xlane.f32.xlu0 %v1393
          %v1428 = vpop.xlane.xlu0 %1427
          %1429 = vmax.xlane.f32.xlu0 %v1394
          %v1430 = vpop.xlane.xlu0 %1429
          %1431 = vmax.xlane.f32.xlu0 %v1395
          %v1432 = vpop.xlane.xlu0 %1431
          %1433 = vmax.xlane.f32.xlu0 %v1396
          %v1434 = vpop.xlane.xlu0 %1433
          %1435 = vmax.xlane.f32.xlu0 %v1397
          %v1436 = vpop.xlane.xlu0 %1435
          %1437 = vmax.xlane.f32.xlu0 %v1398
          %v1438 = vpop.xlane.xlu0 %1437
          %1439 = vmax.xlane.f32.xlu0 %v1399
          %v1440 = vpop.xlane.xlu0 %1439
          %1441 = vmax.xlane.f32.xlu0 %v1400
          %v1442 = vpop.xlane.xlu0 %1441
          %1443 = vmax.xlane.f32.xlu0 %v1401
          %v1444 = vpop.xlane.xlu0 %1443
          %1445 = vmax.xlane.f32.xlu0 %v1402
          %v1446 = vpop.xlane.xlu0 %1445
          %1447 = vmax.xlane.f32.xlu0 %v1403
          %v1448 = vpop.xlane.xlu0 %1447
          %1449 = vmax.xlane.f32.xlu0 %v1404
          %v1450 = vpop.xlane.xlu0 %1449
          %1451 = vmax.xlane.f32.xlu0 %v1405
          %v1452 = vpop.xlane.xlu0 %1451
          %1453 = vmax.xlane.f32.xlu0 %v1406
          %v1454 = vpop.xlane.xlu0 %1453
          %1455 = vmax.xlane.f32.xlu0 %v1407
          %v1456 = vpop.xlane.xlu0 %1455
          %1457 = vmax.xlane.f32.xlu0 %v1408
          %v1458 = vpop.xlane.xlu0 %1457
          %1459 = vmax.xlane.f32.xlu0 %v1409
          %v1460 = vpop.xlane.xlu0 %1459
          %1461 = vmax.xlane.f32.xlu0 %v1410
          %v1462 = vpop.xlane.xlu0 %1461
          %1463 = vmax.xlane.f32.xlu0 %v1411
          %v1464 = vpop.xlane.xlu0 %1463
          %1465 = vmax.xlane.f32.xlu0 %v1412
          %v1466 = vpop.xlane.xlu0 %1465
          %1467 = vmax.xlane.f32.xlu0 %v1413
          %v1468 = vpop.xlane.xlu0 %1467
          %1469 = vmax.xlane.f32.xlu0 %v1414
          %v1470 = vpop.xlane.xlu0 %1469
          %1471 = vmax.xlane.f32.xlu0 %v1415
          %v1472 = vpop.xlane.xlu0 %1471
          %1473 = vmax.xlane.f32.xlu0 %v1416
          %v1474 = vpop.xlane.xlu0 %1473
          %1475 = vmax.xlane.f32.xlu0 %v1417
          %v1476 = vpop.xlane.xlu0 %1475
          %1477 = vmax.xlane.f32.xlu0 %v1418
          %v1478 = vpop.xlane.xlu0 %1477
          %1479 = vmax.xlane.f32.xlu0 %v1419
          %v1480 = vpop.xlane.xlu0 %1479
          %1481 = vmax.xlane.f32.xlu0 %v1420
          %v1482 = vpop.xlane.xlu0 %1481
          %1483 = vmax.xlane.f32.xlu0 %v1421
          %v1484 = vpop.xlane.xlu0 %1483
          %1485 = vmax.xlane.f32.xlu0 %v1422
          %v1486 = vpop.xlane.xlu0 %1485
          %v1487 = vsub.f32 %v1391, %v1424
          %v1488 = vsub.f32 %v1392, %v1426
          %v1489 = vsub.f32 %v1393, %v1428
          %v1490 = vsub.f32 %v1394, %v1430
          %v1491 = vsub.f32 %v1395, %v1432
          %v1492 = vsub.f32 %v1396, %v1434
          %v1493 = vsub.f32 %v1397, %v1436
          %v1494 = vsub.f32 %v1398, %v1438
          %v1495 = vsub.f32 %v1399, %v1440
          %v1496 = vsub.f32 %v1400, %v1442
          %v1497 = vsub.f32 %v1401, %v1444
          %v1498 = vsub.f32 %v1402, %v1446
          %v1499 = vsub.f32 %v1403, %v1448
          %v1500 = vsub.f32 %v1404, %v1450
          %v1501 = vsub.f32 %v1405, %v1452
          %v1502 = vsub.f32 %v1406, %v1454
          %v1503 = vsub.f32 %v1407, %v1456
          %v1504 = vsub.f32 %v1408, %v1458
          %v1505 = vsub.f32 %v1409, %v1460
          %v1506 = vsub.f32 %v1410, %v1462
          %v1507 = vsub.f32 %v1411, %v1464
          %v1508 = vsub.f32 %v1412, %v1466
          %v1509 = vsub.f32 %v1413, %v1468
          %v1510 = vsub.f32 %v1414, %v1470
          %v1511 = vsub.f32 %v1415, %v1472
          %v1512 = vsub.f32 %v1416, %v1474
          %v1513 = vsub.f32 %v1417, %v1476
          %v1514 = vsub.f32 %v1418, %v1478
          %v1515 = vsub.f32 %v1419, %v1480
          %v1516 = vsub.f32 %v1420, %v1482
          %v1517 = vsub.f32 %v1421, %v1484
          %v1518 = vsub.f32 %v1422, %v1486
          %v1519 = vmul.f32 %v1487, 1.442695
          %v1520 = vpow.pop %v1519
          %v1521 = vmul.f32 %v1488, 1.442695
          %v1522 = vpow.pop %v1521
          %v1523 = vmul.f32 %v1489, 1.442695
          %v1524 = vpow.pop %v1523
          %v1525 = vmul.f32 %v1490, 1.442695
          %v1526 = vpow.pop %v1525
          %v1527 = vmul.f32 %v1491, 1.442695
          %v1528 = vpow.pop %v1527
          %v1529 = vmul.f32 %v1492, 1.442695
          %v1530 = vpow.pop %v1529
          %v1531 = vmul.f32 %v1493, 1.442695
          %v1532 = vpow.pop %v1531
          %v1533 = vmul.f32 %v1494, 1.442695
          %v1534 = vpow.pop %v1533
          %v1535 = vmul.f32 %v1495, 1.442695
          %v1536 = vpow.pop %v1535
          %v1537 = vmul.f32 %v1496, 1.442695
          %v1538 = vpow.pop %v1537
          %v1539 = vmul.f32 %v1497, 1.442695
          %v1540 = vpow.pop %v1539
          %v1541 = vmul.f32 %v1498, 1.442695
          %v1542 = vpow.pop %v1541
          %v1543 = vmul.f32 %v1499, 1.442695
          %v1544 = vpow.pop %v1543
          %v1545 = vmul.f32 %v1500, 1.442695
          %v1546 = vpow.pop %v1545
          %v1547 = vmul.f32 %v1501, 1.442695
          %v1548 = vpow.pop %v1547
          %v1549 = vmul.f32 %v1502, 1.442695
          %v1550 = vpow.pop %v1549
          %v1551 = vmul.f32 %v1503, 1.442695
          %v1552 = vpow.pop %v1551
          %v1553 = vmul.f32 %v1504, 1.442695
          %v1554 = vpow.pop %v1553
          %v1555 = vmul.f32 %v1505, 1.442695
          %v1556 = vpow.pop %v1555
          %v1557 = vmul.f32 %v1506, 1.442695
          %v1558 = vpow.pop %v1557
          %v1559 = vmul.f32 %v1507, 1.442695
          %v1560 = vpow.pop %v1559
          %v1561 = vmul.f32 %v1508, 1.442695
          %v1562 = vpow.pop %v1561
          %v1563 = vmul.f32 %v1509, 1.442695
          %v1564 = vpow.pop %v1563
          %v1565 = vmul.f32 %v1510, 1.442695
          %v1566 = vpow.pop %v1565
          %v1567 = vmul.f32 %v1511, 1.442695
          %v1568 = vpow.pop %v1567
          %v1569 = vmul.f32 %v1512, 1.442695
          %v1570 = vpow.pop %v1569
          %v1571 = vmul.f32 %v1513, 1.442695
          %v1572 = vpow.pop %v1571
          %v1573 = vmul.f32 %v1514, 1.442695
          %v1574 = vpow.pop %v1573
          %v1575 = vmul.f32 %v1515, 1.442695
          %v1576 = vpow.pop %v1575
          %v1577 = vmul.f32 %v1516, 1.442695
          %v1578 = vpow.pop %v1577
          %v1579 = vmul.f32 %v1517, 1.442695
          %v1580 = vpow.pop %v1579
          %v1581 = vmul.f32 %v1518, 1.442695
          %v1582 = vpow.pop %v1581
          %1583 = vadd.xlane.f32.xlu0 %v1520
          %v1584 = vpop.xlane.xlu0 %1583
          %1585 = vadd.xlane.f32.xlu0 %v1522
          %v1586 = vpop.xlane.xlu0 %1585
          %1587 = vadd.xlane.f32.xlu0 %v1524
          %v1588 = vpop.xlane.xlu0 %1587
          %1589 = vadd.xlane.f32.xlu0 %v1526
          %v1590 = vpop.xlane.xlu0 %1589
          %1591 = vadd.xlane.f32.xlu0 %v1528
          %v1592 = vpop.xlane.xlu0 %1591
          %1593 = vadd.xlane.f32.xlu0 %v1530
          %v1594 = vpop.xlane.xlu0 %1593
          %1595 = vadd.xlane.f32.xlu0 %v1532
          %v1596 = vpop.xlane.xlu0 %1595
          %1597 = vadd.xlane.f32.xlu0 %v1534
          %v1598 = vpop.xlane.xlu0 %1597
          %1599 = vadd.xlane.f32.xlu0 %v1536
          %v1600 = vpop.xlane.xlu0 %1599
          %1601 = vadd.xlane.f32.xlu0 %v1538
          %v1602 = vpop.xlane.xlu0 %1601
          %1603 = vadd.xlane.f32.xlu0 %v1540
          %v1604 = vpop.xlane.xlu0 %1603
          %1605 = vadd.xlane.f32.xlu0 %v1542
          %v1606 = vpop.xlane.xlu0 %1605
          %1607 = vadd.xlane.f32.xlu0 %v1544
          %v1608 = vpop.xlane.xlu0 %1607
          %1609 = vadd.xlane.f32.xlu0 %v1546
          %v1610 = vpop.xlane.xlu0 %1609
          %1611 = vadd.xlane.f32.xlu0 %v1548
          %v1612 = vpop.xlane.xlu0 %1611
          %1613 = vadd.xlane.f32.xlu0 %v1550
          %v1614 = vpop.xlane.xlu0 %1613
          %1615 = vadd.xlane.f32.xlu0 %v1552
          %v1616 = vpop.xlane.xlu0 %1615
          %1617 = vadd.xlane.f32.xlu0 %v1554
          %v1618 = vpop.xlane.xlu0 %1617
          %1619 = vadd.xlane.f32.xlu0 %v1556
          %v1620 = vpop.xlane.xlu0 %1619
          %1621 = vadd.xlane.f32.xlu0 %v1558
          %v1622 = vpop.xlane.xlu0 %1621
          %1623 = vadd.xlane.f32.xlu0 %v1560
          %v1624 = vpop.xlane.xlu0 %1623
          %1625 = vadd.xlane.f32.xlu0 %v1562
          %v1626 = vpop.xlane.xlu0 %1625
          %1627 = vadd.xlane.f32.xlu0 %v1564
          %v1628 = vpop.xlane.xlu0 %1627
          %1629 = vadd.xlane.f32.xlu0 %v1566
          %v1630 = vpop.xlane.xlu0 %1629
          %1631 = vadd.xlane.f32.xlu0 %v1568
          %v1632 = vpop.xlane.xlu0 %1631
          %1633 = vadd.xlane.f32.xlu0 %v1570
          %v1634 = vpop.xlane.xlu0 %1633
          %1635 = vadd.xlane.f32.xlu0 %v1572
          %v1636 = vpop.xlane.xlu0 %1635
          %1637 = vadd.xlane.f32.xlu0 %v1574
          %v1638 = vpop.xlane.xlu0 %1637
          %1639 = vadd.xlane.f32.xlu0 %v1576
          %v1640 = vpop.xlane.xlu0 %1639
          %1641 = vadd.xlane.f32.xlu0 %v1578
          %v1642 = vpop.xlane.xlu0 %1641
          %1643 = vadd.xlane.f32.xlu0 %v1580
          %v1644 = vpop.xlane.xlu0 %1643
          %1645 = vadd.xlane.f32.xlu0 %v1582
          %v1646 = vpop.xlane.xlu0 %1645
          %v1647 = vrcp.pop %v1584
          %v1648 = vrcp.pop %v1586
          %v1649 = vrcp.pop %v1588
          %v1650 = vrcp.pop %v1590
          %v1651 = vrcp.pop %v1592
          %v1652 = vrcp.pop %v1594
          %v1653 = vrcp.pop %v1596
          %v1654 = vrcp.pop %v1598
          %v1655 = vrcp.pop %v1600
          %v1656 = vrcp.pop %v1602
          %v1657 = vrcp.pop %v1604
          %v1658 = vrcp.pop %v1606
          %v1659 = vrcp.pop %v1608
          %v1660 = vrcp.pop %v1610
          %v1661 = vrcp.pop %v1612
          %v1662 = vrcp.pop %v1614
          %v1663 = vrcp.pop %v1616
          %v1664 = vrcp.pop %v1618
          %v1665 = vrcp.pop %v1620
          %v1666 = vrcp.pop %v1622
          %v1667 = vrcp.pop %v1624
          %v1668 = vrcp.pop %v1626
          %v1669 = vrcp.pop %v1628
          %v1670 = vrcp.pop %v1630
          %v1671 = vrcp.pop %v1632
          %v1672 = vrcp.pop %v1634
          %v1673 = vrcp.pop %v1636
          %v1674 = vrcp.pop %v1638
          %v1675 = vrcp.pop %v1640
          %v1676 = vrcp.pop %v1642
          %v1677 = vrcp.pop %v1644
          %v1678 = vrcp.pop %v1646
          %v1679 = vmul.f32 %v1520, %v1647
          %v1680 = vmul.f32 %v1522, %v1648
          %v1681 = vmul.f32 %v1524, %v1649
          %v1682 = vmul.f32 %v1526, %v1650
          %v1683 = vmul.f32 %v1528, %v1651
          %v1684 = vmul.f32 %v1530, %v1652
          %v1685 = vmul.f32 %v1532, %v1653
          %v1686 = vmul.f32 %v1534, %v1654
          %v1687 = vmul.f32 %v1536, %v1655
          %v1688 = vmul.f32 %v1538, %v1656
          %v1689 = vmul.f32 %v1540, %v1657
          %v1690 = vmul.f32 %v1542, %v1658
          %v1691 = vmul.f32 %v1544, %v1659
          %v1692 = vmul.f32 %v1546, %v1660
          %v1693 = vmul.f32 %v1548, %v1661
          %v1694 = vmul.f32 %v1550, %v1662
          %v1695 = vmul.f32 %v1552, %v1663
          %v1696 = vmul.f32 %v1554, %v1664
          %v1697 = vmul.f32 %v1556, %v1665
          %v1698 = vmul.f32 %v1558, %v1666
          %v1699 = vmul.f32 %v1560, %v1667
          %v1700 = vmul.f32 %v1562, %v1668
          %v1701 = vmul.f32 %v1564, %v1669
          %v1702 = vmul.f32 %v1566, %v1670
          %v1703 = vmul.f32 %v1568, %v1671
          %v1704 = vmul.f32 %v1570, %v1672
          %v1705 = vmul.f32 %v1572, %v1673
          %v1706 = vmul.f32 %v1574, %v1674
          %v1707 = vmul.f32 %v1576, %v1675
          %v1708 = vmul.f32 %v1578, %v1676
          %v1709 = vmul.f32 %v1580, %v1677
          %v1710 = vmul.f32 %v1582, %v1678
          %s1711 = scalar_lea.vmem [#allocation11], %s1248
          %1712 = vst [vmem:[%s1711] sm:$0xff] %v1679
          %1713 = vst [vmem:[%s1711 + $0x8] sm:$0xff] %v1680
          %1714 = vst [vmem:[%s1711 + $0x10] sm:$0xff] %v1681
          %1715 = vst [vmem:[%s1711 + $0x18] sm:$0xff] %v1682
          %1716 = vst [vmem:[%s1711 + $0x20] sm:$0xff] %v1683
          %1717 = vst [vmem:[%s1711 + $0x28] sm:$0xff] %v1684
          %1718 = vst [vmem:[%s1711 + $0x30] sm:$0xff] %v1685
          %1719 = vst [vmem:[%s1711 + $0x38] sm:$0xff] %v1686
          %1720 = vst [vmem:[%s1711 + $0x40] sm:$0xff] %v1687
          %1721 = vst [vmem:[%s1711 + $0x48] sm:$0xff] %v1688
          %1722 = vst [vmem:[%s1711 + $0x50] sm:$0xff] %v1689
          %1723 = vst [vmem:[%s1711 + $0x58] sm:$0xff] %v1690
          %1724 = vst [vmem:[%s1711 + $0x60] sm:$0xff] %v1691
          %1725 = vst [vmem:[%s1711 + $0x68] sm:$0xff] %v1692
          %1726 = vst [vmem:[%s1711 + $0x70] sm:$0xff] %v1693
          %1727 = vst [vmem:[%s1711 + $0x78] sm:$0xff] %v1694
          %1728 = vst [vmem:[%s1711 + $0x80] sm:$0xff] %v1695
          %1729 = vst [vmem:[%s1711 + $0x88] sm:$0xff] %v1696
          %1730 = vst [vmem:[%s1711 + $0x90] sm:$0xff] %v1697
          %1731 = vst [vmem:[%s1711 + $0x98] sm:$0xff] %v1698
          %1732 = vst [vmem:[%s1711 + $0xa0] sm:$0xff] %v1699
          %1733 = vst [vmem:[%s1711 + $0xa8] sm:$0xff] %v1700
          %1734 = vst [vmem:[%s1711 + $0xb0] sm:$0xff] %v1701
          %1735 = vst [vmem:[%s1711 + $0xb8] sm:$0xff] %v1702
          %1736 = vst [vmem:[%s1711 + $0xc0] sm:$0xff] %v1703
          %1737 = vst [vmem:[%s1711 + $0xc8] sm:$0xff] %v1704
          %1738 = vst [vmem:[%s1711 + $0xd0] sm:$0xff] %v1705
          %1739 = vst [vmem:[%s1711 + $0xd8] sm:$0xff] %v1706
          %1740 = vst [vmem:[%s1711 + $0xe0] sm:$0xff] %v1707
          %1741 = vst [vmem:[%s1711 + $0xe8] sm:$0xff] %v1708
          %1742 = vst [vmem:[%s1711 + $0xf0] sm:$0xff] %v1709
          %1743 = vst [vmem:[%s1711 + $0xf8] sm:$0xff] %v1710
        $region64: #{tpu_custom_call.1} parent=31 // pred_fallthru
          _
        // Predicated region
        $region65: #{tpu_custom_call.1} parent=31 // pred_check
          %p1744 = pneg %p133
        $region66: #{tpu_custom_call.1} parent=31 // pred_check_branch
          %1746 = sbr.rel (%p1744) target = $region68
        $region67: #{tpu_custom_call.1} parent=31 // pred_region
          %s1748 = ssub.s32 4096, 4096
          %1749 = vsyncadd [#allocation7], %s1748
          %s1750 = sshll.u32 [#allocation11], 4
          %s1751 = int_to_ptr.vmem [resolvable:$true] %s1750
          %1756 = dma.vmem_to_hbm [thread:$0]  %s1751, 4096, %s3, [#allocation7], 128, 128, 8
        $region68: #{tpu_custom_call.1} parent=31 // pred_fallthru
          _
        // Predicated region
        $region69: #{tpu_custom_call.1} parent=31 // pred_check
          %p1757 = pneg %p133
        $region70: #{tpu_custom_call.1} parent=31 // pred_check_branch
          %1759 = sbr.rel (%p1757) target = $region72
        $region71: #{tpu_custom_call.1} parent=31 // pred_region
          %1760 = dma.done [#allocation7], 4096
        $region72: #{tpu_custom_call.1} parent=31 // pred_fallthru
          _
      $region32: #{tpu_custom_call.1} parent=5 // pred_fallthru
        _
      %p1761 = scmp.le.s32.totalorder 2, %s16
      // Predicated region
      $region73: #{tpu_custom_call.1} parent=5 // pred_check
        %p1762 = pneg %p1761
      $region74: #{tpu_custom_call.1} parent=5 // pred_check_branch
        %1764 = sbr.rel (%p1762) target = $region76
      $region75: #{tpu_custom_call.1} parent=5 // pred_region
        %s1765 = ssub.s32 %s16, 2
      $region76: #{tpu_custom_call.1} parent=5 // pred_fallthru
        _
    $region6: #{tpu_custom_call.1} parent=1 // loop_footer
      %s20 = sadd.s32 1, %s16
    $region7: #{tpu_custom_call.1} parent=1 // loop_footer_branch
      %15 = sbr.rel target = $region3
    $region8: #{tpu_custom_call.1} parent=1 // loop_exit
      _
    %1766 = vsyncpa [#allocation6], 1
    %s1767 = scalar_lea.sflag [#allocation6], 1
    %1768 = vsyncpa %s1767, 1
    %1769 = vsyncpa [#allocation9], 1
    %s1770 = scalar_lea.sflag [#allocation9], 1
    %1771 = vsyncpa %s1770, 1
    %1772 = vsyncpa [#allocation7], 1
    %s1773 = scalar_lea.sflag [#allocation7], 1
    %1774 = vsyncpa %s1773, 1

</llo_original>
